<compile_context>
chip_gen: v6e
topology: v6e:2x2x1
jax: 0.10.0
libtpu: 0.0.40
codegen_flags: <defaults>
</compile_context>

<pallas_src>
from functools import partial

import numpy as np
import jax
import jax.numpy as jnp
from jax.experimental import pallas as pl
from jax.experimental.pallas import tpu as pltpu

_NEG_BIG = -1e30  # additive-bias "drop this key" value (f32; exp underflows to 0)


# ----------------------------------------------------------------------------
# helpers
# ----------------------------------------------------------------------------
def _round_up(x, m):
    return ((x + m - 1) // m) * m


def _pad_to(a, shape):
    pads = [(0, s - d) for d, s in zip(a.shape, shape)]
    if all(p[1] == 0 for p in pads):
        return a
    return jnp.pad(a, pads)


# ----------------------------------------------------------------------------
# Tiled linear kernel:  y = x @ wT + b   (nn.Linear semantics, wT pre-transposed,
# bf16 operands, f32 accumulator)
# ----------------------------------------------------------------------------
def _linear_kernel(x_ref, wT_ref, b_ref, o_ref, acc_ref):
    k = pl.program_id(2)

    @pl.when(k == 0)
    def _():
        acc_ref[...] = jnp.zeros_like(acc_ref)

    acc_ref[...] += jnp.dot(x_ref[...], wT_ref[...],
                            preferred_element_type=jnp.float32)

    @pl.when(k == pl.num_programs(2) - 1)
    def _():
        o_ref[...] = (acc_ref[...] + b_ref[...]).astype(o_ref.dtype)


def pallas_linear(x2d, wT, b, *, bm=512, bn=512, bk=512, out_dtype=jnp.float32):
    """y = x2d @ wT + b. x2d/wT should be bf16; accumulation is f32."""
    M, Cin = x2d.shape
    Cout = wT.shape[1]

    bm = min(bm, _round_up(M, 8))
    bk = min(bk, _round_up(Cin, 128))
    bn = min(bn, _round_up(Cout, 128))
    Mp = _round_up(M, bm)
    Kp = _round_up(Cin, bk)
    Np = _round_up(Cout, bn)

    xp = _pad_to(x2d, (Mp, Kp))
    wp = _pad_to(wT, (Kp, Np))
    bp = _pad_to(b.astype(jnp.float32).reshape(1, -1), (1, Np))

    out = pl.pallas_call(
        _linear_kernel,
        out_shape=jax.ShapeDtypeStruct((Mp, Np), out_dtype),
        grid_spec=pltpu.PrefetchScalarGridSpec(
            num_scalar_prefetch=0,
            grid=(Mp // bm, Np // bn, Kp // bk),
            in_specs=[
                pl.BlockSpec((bm, bk), lambda i, j, k: (i, k)),
                pl.BlockSpec((bk, bn), lambda i, j, k: (k, j)),
                pl.BlockSpec((1, bn), lambda i, j, k: (0, j)),
            ],
            out_specs=pl.BlockSpec((bm, bn), lambda i, j, k: (i, j)),
            scratch_shapes=[pltpu.VMEM((bm, bn), jnp.float32)],
        ),
        compiler_params=pltpu.CompilerParams(
            dimension_semantics=("parallel", "parallel", "arbitrary"),
            vmem_limit_bytes=32 * 1024 * 1024,
        ),
    )(xp, wp, bp)
    return out[:M, :Cout]


# ----------------------------------------------------------------------------
# Flash-style distance-softmax attention kernel.
#   q already carries the 2*scale factor; k is F.normalize()d, so
#   softmax(-scale*||q-k||^2) over keys == softmax(q_scaled . k).
#   bias row: 0 for keys in the selected block, -1e30 for unselected/padded.
# ----------------------------------------------------------------------------
def _mom_attn_kernel(q_ref, k_ref, v_ref, bias_ref, o_ref, m_sc, l_sc, acc_sc):
    ki = pl.program_id(2)

    @pl.when(ki == 0)
    def _():
        m_sc[...] = jnp.full_like(m_sc, -jnp.inf)
        l_sc[...] = jnp.zeros_like(l_sc)
        acc_sc[...] = jnp.zeros_like(acc_sc)

    q = q_ref[0]                                             # (tq, hd) bf16
    k = k_ref[0]                                             # (tk, hd) bf16
    s = jax.lax.dot_general(
        q, k, (((1,), (1,)), ((), ())),
        preferred_element_type=jnp.float32)                  # (tq, tk) f32
    s = s + bias_ref[...]                                    # additive sel/pad mask

    m_prev = m_sc[...]
    m_new = jnp.maximum(m_prev, jnp.max(s, axis=-1, keepdims=True))
    alpha = jnp.exp(m_prev - m_new)
    p = jnp.exp(s - m_new)                                   # f32 (exp->0 for masked)
    l_sc[...] = alpha * l_sc[...] + jnp.sum(p, axis=-1, keepdims=True)
    acc_sc[...] = alpha * acc_sc[...] + jnp.dot(
        p.astype(jnp.bfloat16), v_ref[0], preferred_element_type=jnp.float32)
    m_sc[...] = m_new

    @pl.when(ki == pl.num_programs(2) - 1)
    def _():
        o_ref[0] = (acc_sc[...] *
                    pl.reciprocal(l_sc[...], approx=True)).astype(o_ref.dtype)


def mom_attention_core(q, k, v, bias, *, tq=512, tk=512):
    """q/k/v: (G, N, hd) bf16 (G = B*H, scale folded into q); bias: (1, N) f32.
    Returns (G, N, hd) bf16."""
    G, N, hd = q.shape
    Nk = k.shape[1]

    tq = min(tq, _round_up(N, 8))
    tk = min(tk, _round_up(Nk, 128))
    Np = _round_up(N, tq)
    Nkp = _round_up(Nk, tk)

    qp = _pad_to(q, (G, Np, hd))
    kp = _pad_to(k, (G, Nkp, hd))
    vp = _pad_to(v, (G, Nkp, hd))
    if Nkp != Nk:  # padded key rows get the drop bias too
        bias = jnp.pad(bias, ((0, 0), (0, Nkp - Nk)), constant_values=_NEG_BIG)

    # TODO(synk): when hd == 64, process 2 heads per grid step (lane-dense 128
    # last dim) or emit a head-merged (B, N, H*hd) slab; kept per-head hd here
    # so the last block dim always equals the full array dim (legal for any hd).
    # TODO(synk): read q/k/v straight from the (B, N, 3, H, hd) qkv layout via
    # slot/head index_maps to skip the wrapper relayout (needs a second-minor
    # block dim of 1 over H, which the (8,128) block rule makes fragile).
    out = pl.pallas_call(
        _mom_attn_kernel,
        out_shape=jax.ShapeDtypeStruct((G, Np, hd), jnp.bfloat16),
        grid_spec=pltpu.PrefetchScalarGridSpec(
            num_scalar_prefetch=0,
            grid=(G, Np // tq, Nkp // tk),
            in_specs=[
                pl.BlockSpec((1, tq, hd), lambda g, qi, ki: (g, qi, 0)),
                pl.BlockSpec((1, tk, hd), lambda g, qi, ki: (g, ki, 0)),
                pl.BlockSpec((1, tk, hd), lambda g, qi, ki: (g, ki, 0)),
                pl.BlockSpec((1, tk), lambda g, qi, ki: (0, ki)),
            ],
            out_specs=pl.BlockSpec((1, tq, hd), lambda g, qi, ki: (g, qi, 0)),
            scratch_shapes=[
                pltpu.VMEM((tq, 1), jnp.float32),    # running max
                pltpu.VMEM((tq, 1), jnp.float32),    # running denom
                pltpu.VMEM((tq, hd), jnp.float32),   # running numerator
            ],
        ),
        compiler_params=pltpu.CompilerParams(
            dimension_semantics=("parallel", "parallel", "arbitrary"),
            vmem_limit_bytes=32 * 1024 * 1024,
        ),
    )(qp, kp, vp, bias)
    return out[:, :N, :]


# ----------------------------------------------------------------------------
# Full forward (jitted; random block index sets are precomputed host-side,
# exactly as in the reference's np.random.choice).
# ----------------------------------------------------------------------------
@partial(jax.jit, static_argnames=("num_heads", "scale"))
def mom_attention_forward(x, sel_mat, qkv_wT, qkv_b, proj_wT, proj_b,
                          *, num_heads, scale):
    B, N, C = x.shape
    H = num_heads
    hd = C // H
    K = sel_mat.shape[0]

    # qkv projection (tiled Pallas matmul, bf16 operands / f32 accumulate)
    qkv = pallas_linear(x.reshape(B * N, C).astype(jnp.bfloat16),
                        qkv_wT, qkv_b, out_dtype=jnp.float32)       # (B*N, 3C)
    qkv = qkv.reshape(B, N, 3, H, hd)
    q = qkv[:, :, 0].transpose(0, 2, 1, 3)                          # (B,H,N,hd) f32
    k = qkv[:, :, 1].transpose(0, 2, 1, 3)
    v = qkv[:, :, 2].transpose(0, 2, 1, 3)

    # F.normalize(k, dim=-1)
    k = k / jnp.maximum(jnp.linalg.norm(k, axis=-1, keepdims=True), 1e-12)

    # Block selection (no_grad in reference).  Since ||k||==1 and every
    # candidate block has the same size M, argsort(likelihood) depends only on
    # the q-sum / k-block-sum dot term (likelihood = const + 2*scale*dot_term).
    q_sum = jnp.sum(q, axis=2)                                      # (B,H,hd)
    t = jnp.einsum("bhnd,bhd->n", k, q_sum)                         # (N,)
    dot_term = sel_mat @ t                                          # (K,)
    b_idx = jnp.argsort(dot_term)[K // 2]                           # median pick
    sel_row = sel_mat[b_idx]                                        # (N,) 0/1

    # Selection folded into an additive bias (replaces the K/V gathers):
    # unselected keys get -1e30 -> exp underflows to exactly 0 in the softmax.
    bias = jnp.where(sel_row > 0.5, 0.0, _NEG_BIG).astype(jnp.float32)[None, :]

    # bf16 operands for the attention kernel; fold 2*scale into q at cast time;
    # merge B*H into one leading "parallel" grid axis.
    scale2 = 2.0 * float(scale)
    q_b = (q * scale2).astype(jnp.bfloat16).reshape(B * H, N, hd)
    k_b = k.astype(jnp.bfloat16).reshape(B * H, N, hd)
    v_b = v.astype(jnp.bfloat16).reshape(B * H, N, hd)

    # flash-style distance-softmax attention (Pallas hot path), bf16 output
    out = mom_attention_core(q_b, k_b, v_b, bias)                   # (B*H,N,hd)

    # merge heads + output projection (tiled Pallas matmul)
    out = out.reshape(B, H, N, hd).transpose(0, 2, 1, 3).reshape(B * N, C)
    out = pallas_linear(out, proj_wT, proj_b, out_dtype=jnp.float32)
    return out.reshape(B, N, C)


# ----------------------------------------------------------------------------
# Module wrapper (parameters + host-side random block sampling = glue)
# ----------------------------------------------------------------------------
class MomAttentionPallas:
    def __init__(self, dim, num_heads=8, qkv_bias=False,
                 outlier_fraction=0.05, K="auto", key=None):
        assert dim % num_heads == 0
        self.dim = dim
        self.num_heads = num_heads
        self.head_dim = dim // num_heads
        self.scale = float(self.head_dim ** (-0.5))
        self.outlier = outlier_fraction
        self.K = K

        key = jax.random.PRNGKey(42) if key is None else key
        k1, k2, k3 = jax.random.split(key, 3)
        s = 1.0 / np.sqrt(dim)
        qkv_w = jax.random.uniform(k1, (3 * dim, dim), jnp.float32, -s, s)
        proj_w = jax.random.uniform(k2, (dim, dim), jnp.float32, -s, s)
        # pre-transpose (nn.Linear stores (out,in); kernel wants (in,out)) and
        # pre-cast to bf16 once at init -> halves repeated weight DMA.
        self.qkv_wT = jnp.transpose(qkv_w).astype(jnp.bfloat16)
        self.proj_wT = jnp.transpose(proj_w).astype(jnp.bfloat16)
        self.qkv_b = (jax.random.uniform(k3, (3 * dim,), jnp.float32, -s, s)
                      if qkv_bias else jnp.zeros((3 * dim,), jnp.float32))
        self.proj_b = jnp.zeros((dim,), jnp.float32)
        # attn_drop / proj_drop default to 0.0 -> identity.

    def divide_batch(self, N, K, rng):
        init_size = [int(N * (1 - self.outlier)) for _ in range(K)]
        density = np.ones(N) / N
        all_indices = np.arange(N)
        indices = []
        for i in range(K):
            idx = rng.choice(all_indices, size=init_size[i],
                             replace=False, p=density)
            indices.append(np.sort(idx))
            if i == K - 1:
                break
        return indices

    def forward(self, x, np_rng):
        B, N, C = x.shape
        # do NOT mutate self.K -> no stale K when N changes between calls
        K = self.K if self.K != "auto" else int(2 * N * self.outlier) + 1

        indices = self.divide_batch(N, K, np_rng)
        sel_np = np.zeros((K, N), dtype=np.float32)
        for n, idx in enumerate(indices):
            sel_np[n, idx] = 1.0
        sel_mat = jnp.asarray(sel_np)                                # (K, N)

        return mom_attention_forward(
            x, sel_mat,
            self.qkv_wT, self.qkv_b, self.proj_wT, self.proj_b,
            num_heads=self.num_heads, scale=self.scale)


# ----------------------------------------------------------------------------
if __name__ == "__main__":
    B, N, C, H = 2, 16, 32, 4
    x = jax.random.normal(jax.random.PRNGKey(0), (B, N, C), dtype=jnp.float32)

    module = MomAttentionPallas(dim=C, num_heads=H, qkv_bias=False,
                                outlier_fraction=0.05, K="auto",
                                key=jax.random.PRNGKey(1))
    np_rng = np.random.default_rng(0)   # deterministic stand-in for np.random.choice

    y = module.forward(x, np_rng)
    jax.block_until_ready(y)
    assert y.shape == (B, N, C)
    assert bool(jnp.all(jnp.isfinite(y)))
    print("KERNEL_OK")
</pallas_src>

<mosaic_0001>
module attributes {stable_mosaic.version = 11 : i64} {
  func.func @_linear_kernel(%arg0: i32, %arg1: i32, %arg2: i32, %arg3: memref<32x128xbf16, #tpu.memory_space<vmem>>, %arg4: memref<128x128xbf16, #tpu.memory_space<vmem>>, %arg5: memref<1x128xf32, #tpu.memory_space<vmem>>, %arg6: memref<32x128xf32, #tpu.memory_space<vmem>>, %arg7: memref<32x128xf32, #tpu.memory_space<vmem>>) attributes {dimension_semantics = [#tpu.dimension_semantics<parallel>, #tpu.dimension_semantics<parallel>, #tpu.dimension_semantics<arbitrary>], iteration_bounds = array<i64: 1, 1, 1>, scalar_prefetch = 0 : i64, scratch_operands = 1 : i64, tpu.core_type = #tpu.core_type<tc>, window_params = [{transform_indices = @transform_0, window_bounds = array<i64: 32, 128>}, {transform_indices = @transform_1, window_bounds = array<i64: 128, 128>}, {transform_indices = @transform_2, window_bounds = array<i64: 1, 128>}, {transform_indices = @transform_3, window_bounds = array<i64: 32, 128>}]} {
    %c0_i32 = arith.constant 0 : i32
    %0 = arith.cmpi eq, %arg2, %c0_i32 : i32
    %1 = arith.extui %0 : i1 to i32
    %c0_i32_0 = arith.constant 0 : i32
    %2 = arith.cmpi ne, %1, %c0_i32_0 : i32
    scf.if %2 {
      %cst_10 = arith.constant 0.000000e+00 : f32
      %12 = vector.broadcast %cst_10 : f32 to vector<32x128xf32>
      %c0_11 = arith.constant 0 : index
      %c0_12 = arith.constant 0 : index
      %13 = vector.load %arg7[%c0_11, %c0_12] : memref<32x128xf32, #tpu.memory_space<vmem>>, vector<32x128xf32>
      tpu.vector_store %arg7[%c0_11, %c0_12], %12 {strides = array<i32>} : memref<32x128xf32, #tpu.memory_space<vmem>>, vector<32x128xf32>,
    } else {
    }
    %c0 = arith.constant 0 : index
    %c0_1 = arith.constant 0 : index
    %3 = vector.load %arg7[%c0, %c0_1] : memref<32x128xf32, #tpu.memory_space<vmem>>, vector<32x128xf32>
    %c0_2 = arith.constant 0 : index
    %c0_3 = arith.constant 0 : index
    %4 = vector.load %arg3[%c0_2, %c0_3] : memref<32x128xbf16, #tpu.memory_space<vmem>>, vector<32x128xbf16>
    %c0_4 = arith.constant 0 : index
    %c0_5 = arith.constant 0 : index
    %5 = vector.load %arg4[%c0_4, %c0_5] : memref<128x128xbf16, #tpu.memory_space<vmem>>, vector<128x128xbf16>
    %cst = arith.constant dense<0.000000e+00> : vector<32x128xf32>
    %6 = tpu.matmul %4, %5, %cst {dimension_numbers = #tpu.dot_dimension_numbers<[1], [0], [0], [1], [0, 0, 1, 1], [], []>} : vector<32x128xbf16>, vector<128x128xbf16>, vector<32x128xf32> -> vector<32x128xf32>
    %7 = arith.addf %3, %6 : vector<32x128xf32>
    %c0_6 = arith.constant 0 : index
    %c0_7 = arith.constant 0 : index
    %8 = vector.load %arg7[%c0_6, %c0_7] : memref<32x128xf32, #tpu.memory_space<vmem>>, vector<32x128xf32>
    tpu.vector_store %arg7[%c0_6, %c0_7], %7 {strides = array<i32>} : memref<32x128xf32, #tpu.memory_space<vmem>>, vector<32x128xf32>,
    %c0_i32_8 = arith.constant 0 : i32
    %9 = arith.cmpi eq, %arg2, %c0_i32_8 : i32
    %10 = arith.extui %9 : i1 to i32
    %c0_i32_9 = arith.constant 0 : i32
    %11 = arith.cmpi ne, %10, %c0_i32_9 : i32
    scf.if %11 {
      %c0_10 = arith.constant 0 : index
      %c0_11 = arith.constant 0 : index
      %12 = vector.load %arg7[%c0_10, %c0_11] : memref<32x128xf32, #tpu.memory_space<vmem>>, vector<32x128xf32>
      %c0_12 = arith.constant 0 : index
      %c0_13 = arith.constant 0 : index
      %13 = vector.load %arg5[%c0_12, %c0_13] : memref<1x128xf32, #tpu.memory_space<vmem>>, vector<1x128xf32>
      %14 = vector.broadcast %13 : vector<1x128xf32> to vector<32x128xf32>
      %15 = arith.addf %12, %14 : vector<32x128xf32>
      %c0_14 = arith.constant 0 : index
      %c0_15 = arith.constant 0 : index
      %16 = vector.load %arg6[%c0_14, %c0_15] : memref<32x128xf32, #tpu.memory_space<vmem>>, vector<32x128xf32>
      tpu.vector_store %arg6[%c0_14, %c0_15], %15 {strides = array<i32>} : memref<32x128xf32, #tpu.memory_space<vmem>>, vector<32x128xf32>,
    } else {
    }
    return
  }
  func.func @transform_0(%arg0: i32, %arg1: i32, %arg2: i32) -> (i32, i32) {
    %c0_i32 = arith.constant 0 : i32
    return %arg0, %arg2 : i32, i32
  }
  func.func @transform_1(%arg0: i32, %arg1: i32, %arg2: i32) -> (i32, i32) {
    %c0_i32 = arith.constant 0 : i32
    return %arg2, %arg1 : i32, i32
  }
  func.func @transform_2(%arg0: i32, %arg1: i32, %arg2: i32) -> (i32, i32) {
    %c0_i32 = arith.constant 0 : i32
    %c0_i32_0 = arith.constant 0 : i32
    return %c0_i32, %arg1 : i32, i32
  }
  func.func @transform_3(%arg0: i32, %arg1: i32, %arg2: i32) -> (i32, i32) {
    %c0_i32 = arith.constant 0 : i32
    return %arg0, %arg1 : i32, i32
  }
}

module attributes {stable_mosaic.version = 11 : i64} {
  func.func @_mom_attn_kernel(%arg0: i32, %arg1: i32, %arg2: i32, %arg3: memref<1x16x8xbf16, #tpu.memory_space<vmem>>, %arg4: memref<1x128x8xbf16, #tpu.memory_space<vmem>>, %arg5: memref<1x128x8xbf16, #tpu.memory_space<vmem>>, %arg6: memref<1x128xf32, #tpu.memory_space<vmem>>, %arg7: memref<1x16x8xbf16, #tpu.memory_space<vmem>>, %arg8: memref<16x1xf32, #tpu.memory_space<vmem>>, %arg9: memref<16x1xf32, #tpu.memory_space<vmem>>, %arg10: memref<16x8xf32, #tpu.memory_space<vmem>>) attributes {dimension_semantics = [#tpu.dimension_semantics<parallel>, #tpu.dimension_semantics<parallel>, #tpu.dimension_semantics<arbitrary>], iteration_bounds = array<i64: 8, 1, 1>, scalar_prefetch = 0 : i64, scratch_operands = 3 : i64, tpu.core_type = #tpu.core_type<tc>, window_params = [{transform_indices = @transform_0, window_bounds = array<i64: 1, 16, 8>}, {transform_indices = @transform_1, window_bounds = array<i64: 1, 128, 8>}, {transform_indices = @transform_2, window_bounds = array<i64: 1, 128, 8>}, {transform_indices = @transform_3, window_bounds = array<i64: 1, 128>}, {transform_indices = @transform_4, window_bounds = array<i64: 1, 16, 8>}]} {
    %c0_i32 = arith.constant 0 : i32
    %0 = arith.cmpi eq, %arg2, %c0_i32 : i32
    %1 = arith.extui %0 : i1 to i32
    %c0_i32_0 = arith.constant 0 : i32
    %2 = arith.cmpi ne, %1, %c0_i32_0 : i32
    scf.if %2 {
      %cst_28 = arith.constant 0xFF800000 : f32
      %39 = vector.broadcast %cst_28 : f32 to vector<16x1xf32>
      %c0_29 = arith.constant 0 : index
      %c0_30 = arith.constant 0 : index
      %40 = vector.load %arg8[%c0_29, %c0_30] : memref<16x1xf32, #tpu.memory_space<vmem>>, vector<16x1xf32>
      tpu.vector_store %arg8[%c0_29, %c0_30], %39 {strides = array<i32>} : memref<16x1xf32, #tpu.memory_space<vmem>>, vector<16x1xf32>,
      %cst_31 = arith.constant 0.000000e+00 : f32
      %41 = vector.broadcast %cst_31 : f32 to vector<16x1xf32>
      %c0_32 = arith.constant 0 : index
      %c0_33 = arith.constant 0 : index
      %42 = vector.load %arg9[%c0_32, %c0_33] : memref<16x1xf32, #tpu.memory_space<vmem>>, vector<16x1xf32>
      tpu.vector_store %arg9[%c0_32, %c0_33], %41 {strides = array<i32>} : memref<16x1xf32, #tpu.memory_space<vmem>>, vector<16x1xf32>,
      %cst_34 = arith.constant 0.000000e+00 : f32
      %43 = vector.broadcast %cst_34 : f32 to vector<16x8xf32>
      %c0_35 = arith.constant 0 : index
      %c0_36 = arith.constant 0 : index
      %44 = vector.load %arg10[%c0_35, %c0_36] : memref<16x8xf32, #tpu.memory_space<vmem>>, vector<16x8xf32>
      tpu.vector_store %arg10[%c0_35, %c0_36], %43 {strides = array<i32>} : memref<16x8xf32, #tpu.memory_space<vmem>>, vector<16x8xf32>,
    } else {
    }
    %c0 = arith.constant 0 : index
    %c0_1 = arith.constant 0 : index
    %c0_2 = arith.constant 0 : index
    %3 = vector.load %arg3[%c0, %c0_1, %c0_2] : memref<1x16x8xbf16, #tpu.memory_space<vmem>>, vector<1x16x8xbf16>
    %4 = vector.shape_cast %3 : vector<1x16x8xbf16> to vector<16x8xbf16>
    %c0_3 = arith.constant 0 : index
    %c0_4 = arith.constant 0 : index
    %c0_5 = arith.constant 0 : index
    %5 = vector.load %arg4[%c0_3, %c0_4, %c0_5] : memref<1x128x8xbf16, #tpu.memory_space<vmem>>, vector<1x128x8xbf16>
    %6 = vector.shape_cast %5 : vector<1x128x8xbf16> to vector<128x8xbf16>
    %cst = arith.constant dense<0.000000e+00> : vector<16x128xf32>
    %7 = tpu.matmul %4, %6, %cst {dimension_numbers = #tpu.dot_dimension_numbers<[1], [1], [0], [0], [0, 0, 1, 0], [], []>} : vector<16x8xbf16>, vector<128x8xbf16>, vector<16x128xf32> -> vector<16x128xf32>
    %c0_6 = arith.constant 0 : index
    %c0_7 = arith.constant 0 : index
    %8 = vector.load %arg6[%c0_6, %c0_7] : memref<1x128xf32, #tpu.memory_space<vmem>>, vector<1x128xf32>
    %9 = vector.broadcast %8 : vector<1x128xf32> to vector<16x128xf32>
    %10 = arith.addf %7, %9 : vector<16x128xf32>
    %c0_8 = arith.constant 0 : index
    %c0_9 = arith.constant 0 : index
    %11 = vector.load %arg8[%c0_8, %c0_9] : memref<16x1xf32, #tpu.memory_space<vmem>>, vector<16x1xf32>
    %cst_10 = arith.constant dense<0xFF800000> : vector<16xf32>
    %12 = vector.multi_reduction <maximumf>, %10, %cst_10 [1] : vector<16x128xf32> to vector<16xf32>
    %13 = vector.shape_cast %12 : vector<16xf32> to vector<16x1xf32>
    %14 = arith.maximumf %11, %13 : vector<16x1xf32>
    %15 = arith.subf %11, %14 : vector<16x1xf32>
    %16 = math.exp %15 : vector<16x1xf32>
    %17 = vector.broadcast %14 : vector<16x1xf32> to vector<16x128xf32>
    %18 = arith.subf %10, %17 : vector<16x128xf32>
    %19 = math.exp %18 : vector<16x128xf32>
    %c0_11 = arith.constant 0 : index
    %c0_12 = arith.constant 0 : index
    %20 = vector.load %arg9[%c0_11, %c0_12] : memref<16x1xf32, #tpu.memory_space<vmem>>, vector<16x1xf32>
    %21 = arith.mulf %16, %20 : vector<16x1xf32>
    %cst_13 = arith.constant dense<0.000000e+00> : vector<16xf32>
    %22 = vector.multi_reduction <add>, %19, %cst_13 [1] : vector<16x128xf32> to vector<16xf32>
    %23 = vector.shape_cast %22 : vector<16xf32> to vector<16x1xf32>
    %24 = arith.addf %21, %23 : vector<16x1xf32>
    %c0_14 = arith.constant 0 : index
    %c0_15 = arith.constant 0 : index
    %25 = vector.load %arg9[%c0_14, %c0_15] : memref<16x1xf32, #tpu.memory_space<vmem>>, vector<16x1xf32>
    tpu.vector_store %arg9[%c0_14, %c0_15], %24 {strides = array<i32>} : memref<16x1xf32, #tpu.memory_space<vmem>>, vector<16x1xf32>,
    %c0_16 = arith.constant 0 : index
    %c0_17 = arith.constant 0 : index
    %26 = vector.load %arg10[%c0_16, %c0_17] : memref<16x8xf32, #tpu.memory_space<vmem>>, vector<16x8xf32>
    %27 = vector.broadcast %16 : vector<16x1xf32> to vector<16x8xf32>
    %28 = arith.mulf %27, %26 : vector<16x8xf32>
    %29 = arith.truncf %19 : vector<16x128xf32> to vector<16x128xbf16>
    %c0_18 = arith.constant 0 : index
    %c0_19 = arith.constant 0 : index
    %c0_20 = arith.constant 0 : index
    %30 = vector.load %arg5[%c0_18, %c0_19, %c0_20] : memref<1x128x8xbf16, #tpu.memory_space<vmem>>, vector<1x128x8xbf16>
    %31 = vector.shape_cast %30 : vector<1x128x8xbf16> to vector<128x8xbf16>
    %cst_21 = arith.constant dense<0.000000e+00> : vector<16x8xf32>
    %32 = tpu.matmul %29, %31, %cst_21 {dimension_numbers = #tpu.dot_dimension_numbers<[1], [0], [0], [1], [0, 0, 1, 1], [], []>} : vector<16x128xbf16>, vector<128x8xbf16>, vector<16x8xf32> -> vector<16x8xf32>
    %33 = arith.addf %28, %32 : vector<16x8xf32>
    %c0_22 = arith.constant 0 : index
    %c0_23 = arith.constant 0 : index
    %34 = vector.load %arg10[%c0_22, %c0_23] : memref<16x8xf32, #tpu.memory_space<vmem>>, vector<16x8xf32>
    tpu.vector_store %arg10[%c0_22, %c0_23], %33 {strides = array<i32>} : memref<16x8xf32, #tpu.memory_space<vmem>>, vector<16x8xf32>,
    %c0_24 = arith.constant 0 : index
    %c0_25 = arith.constant 0 : index
    %35 = vector.load %arg8[%c0_24, %c0_25] : memref<16x1xf32, #tpu.memory_space<vmem>>, vector<16x1xf32>
    tpu.vector_store %arg8[%c0_24, %c0_25], %14 {strides = array<i32>} : memref<16x1xf32, #tpu.memory_space<vmem>>, vector<16x1xf32>,
    %c0_i32_26 = arith.constant 0 : i32
    %36 = arith.cmpi eq, %arg2, %c0_i32_26 : i32
    %37 = arith.extui %36 : i1 to i32
    %c0_i32_27 = arith.constant 0 : i32
    %38 = arith.cmpi ne, %37, %c0_i32_27 : i32
    scf.if %38 {
      %c0_28 = arith.constant 0 : index
      %c0_29 = arith.constant 0 : index
      %39 = vector.load %arg10[%c0_28, %c0_29] : memref<16x8xf32, #tpu.memory_space<vmem>>, vector<16x8xf32>
      %c0_30 = arith.constant 0 : index
      %c0_31 = arith.constant 0 : index
      %40 = vector.load %arg9[%c0_30, %c0_31] : memref<16x1xf32, #tpu.memory_space<vmem>>, vector<16x1xf32>
      %41 = tpu.reciprocal %40 {approx = true} : vector<16x1xf32> -> vector<16x1xf32>
      %42 = vector.broadcast %41 : vector<16x1xf32> to vector<16x8xf32>
      %43 = arith.mulf %39, %42 : vector<16x8xf32>
      %44 = arith.truncf %43 : vector<16x8xf32> to vector<16x8xbf16>
      %c0_32 = arith.constant 0 : index
      %c0_33 = arith.constant 0 : index
      %c0_34 = arith.constant 0 : index
      %45 = vector.load %arg7[%c0_32, %c0_33, %c0_34] : memref<1x16x8xbf16, #tpu.memory_space<vmem>>, vector<1x16x8xbf16>
      %46 = vector.shape_cast %45 : vector<1x16x8xbf16> to vector<16x8xbf16>
      %47 = vector.shape_cast %44 : vector<16x8xbf16> to vector<1x16x8xbf16>
      tpu.vector_store %arg7[%c0_32, %c0_33, %c0_34], %47 {strides = array<i32>} : memref<1x16x8xbf16, #tpu.memory_space<vmem>>, vector<1x16x8xbf16>,
    } else {
    }
    return
  }
  func.func @transform_0(%arg0: i32, %arg1: i32, %arg2: i32) -> (i32, i32, i32) {
    %c0_i32 = arith.constant 0 : i32
    %c0_i32_0 = arith.constant 0 : i32
    return %arg0, %arg1, %c0_i32 : i32, i32, i32
  }
  func.func @transform_1(%arg0: i32, %arg1: i32, %arg2: i32) -> (i32, i32, i32) {
    %c0_i32 = arith.constant 0 : i32
    %c0_i32_0 = arith.constant 0 : i32
    return %arg0, %arg2, %c0_i32 : i32, i32, i32
  }
  func.func @transform_2(%arg0: i32, %arg1: i32, %arg2: i32) -> (i32, i32, i32) {
    %c0_i32 = arith.constant 0 : i32
    %c0_i32_0 = arith.constant 0 : i32
    return %arg0, %arg2, %c0_i32 : i32, i32, i32
  }
  func.func @transform_3(%arg0: i32, %arg1: i32, %arg2: i32) -> (i32, i32) {
    %c0_i32 = arith.constant 0 : i32
    %c0_i32_0 = arith.constant 0 : i32
    return %c0_i32, %arg2 : i32, i32
  }
  func.func @transform_4(%arg0: i32, %arg1: i32, %arg2: i32) -> (i32, i32, i32) {
    %c0_i32 = arith.constant 0 : i32
    %c0_i32_0 = arith.constant 0 : i32
    return %arg0, %arg1, %c0_i32 : i32, i32, i32
  }
}

module attributes {stable_mosaic.version = 11 : i64} {
  func.func @_linear_kernel(%arg0: i32, %arg1: i32, %arg2: i32, %arg3: memref<32x128xbf16, #tpu.memory_space<vmem>>, %arg4: memref<128x128xbf16, #tpu.memory_space<vmem>>, %arg5: memref<1x128xf32, #tpu.memory_space<vmem>>, %arg6: memref<32x128xf32, #tpu.memory_space<vmem>>, %arg7: memref<32x128xf32, #tpu.memory_space<vmem>>) attributes {dimension_semantics = [#tpu.dimension_semantics<parallel>, #tpu.dimension_semantics<parallel>, #tpu.dimension_semantics<arbitrary>], iteration_bounds = array<i64: 1, 1, 1>, scalar_prefetch = 0 : i64, scratch_operands = 1 : i64, tpu.core_type = #tpu.core_type<tc>, window_params = [{transform_indices = @transform_0, window_bounds = array<i64: 32, 128>}, {transform_indices = @transform_1, window_bounds = array<i64: 128, 128>}, {transform_indices = @transform_2, window_bounds = array<i64: 1, 128>}, {transform_indices = @transform_3, window_bounds = array<i64: 32, 128>}]} {
    %c0_i32 = arith.constant 0 : i32
    %0 = arith.cmpi eq, %arg2, %c0_i32 : i32
    %1 = arith.extui %0 : i1 to i32
    %c0_i32_0 = arith.constant 0 : i32
    %2 = arith.cmpi ne, %1, %c0_i32_0 : i32
    scf.if %2 {
      %cst_10 = arith.constant 0.000000e+00 : f32
      %12 = vector.broadcast %cst_10 : f32 to vector<32x128xf32>
      %c0_11 = arith.constant 0 : index
      %c0_12 = arith.constant 0 : index
      %13 = vector.load %arg7[%c0_11, %c0_12] : memref<32x128xf32, #tpu.memory_space<vmem>>, vector<32x128xf32>
      tpu.vector_store %arg7[%c0_11, %c0_12], %12 {strides = array<i32>} : memref<32x128xf32, #tpu.memory_space<vmem>>, vector<32x128xf32>,
    } else {
    }
    %c0 = arith.constant 0 : index
    %c0_1 = arith.constant 0 : index
    %3 = vector.load %arg7[%c0, %c0_1] : memref<32x128xf32, #tpu.memory_space<vmem>>, vector<32x128xf32>
    %c0_2 = arith.constant 0 : index
    %c0_3 = arith.constant 0 : index
    %4 = vector.load %arg3[%c0_2, %c0_3] : memref<32x128xbf16, #tpu.memory_space<vmem>>, vector<32x128xbf16>
    %c0_4 = arith.constant 0 : index
    %c0_5 = arith.constant 0 : index
    %5 = vector.load %arg4[%c0_4, %c0_5] : memref<128x128xbf16, #tpu.memory_space<vmem>>, vector<128x128xbf16>
    %cst = arith.constant dense<0.000000e+00> : vector<32x128xf32>
    %6 = tpu.matmul %4, %5, %cst {dimension_numbers = #tpu.dot_dimension_numbers<[1], [0], [0], [1], [0, 0, 1, 1], [], []>} : vector<32x128xbf16>, vector<128x128xbf16>, vector<32x128xf32> -> vector<32x128xf32>
    %7 = arith.addf %3, %6 : vector<32x128xf32>
    %c0_6 = arith.constant 0 : index
    %c0_7 = arith.constant 0 : index
    %8 = vector.load %arg7[%c0_6, %c0_7] : memref<32x128xf32, #tpu.memory_space<vmem>>, vector<32x128xf32>
    tpu.vector_store %arg7[%c0_6, %c0_7], %7 {strides = array<i32>} : memref<32x128xf32, #tpu.memory_space<vmem>>, vector<32x128xf32>,
    %c0_i32_8 = arith.constant 0 : i32
    %9 = arith.cmpi eq, %arg2, %c0_i32_8 : i32
    %10 = arith.extui %9 : i1 to i32
    %c0_i32_9 = arith.constant 0 : i32
    %11 = arith.cmpi ne, %10, %c0_i32_9 : i32
    scf.if %11 {
      %c0_10 = arith.constant 0 : index
      %c0_11 = arith.constant 0 : index
      %12 = vector.load %arg7[%c0_10, %c0_11] : memref<32x128xf32, #tpu.memory_space<vmem>>, vector<32x128xf32>
      %c0_12 = arith.constant 0 : index
      %c0_13 = arith.constant 0 : index
      %13 = vector.load %arg5[%c0_12, %c0_13] : memref<1x128xf32, #tpu.memory_space<vmem>>, vector<1x128xf32>
      %14 = vector.broadcast %13 : vector<1x128xf32> to vector<32x128xf32>
      %15 = arith.addf %12, %14 : vector<32x128xf32>
      %c0_14 = arith.constant 0 : index
      %c0_15 = arith.constant 0 : index
      %16 = vector.load %arg6[%c0_14, %c0_15] : memref<32x128xf32, #tpu.memory_space<vmem>>, vector<32x128xf32>
      tpu.vector_store %arg6[%c0_14, %c0_15], %15 {strides = array<i32>} : memref<32x128xf32, #tpu.memory_space<vmem>>, vector<32x128xf32>,
    } else {
    }
    return
  }
  func.func @transform_0(%arg0: i32, %arg1: i32, %arg2: i32) -> (i32, i32) {
    %c0_i32 = arith.constant 0 : i32
    return %arg0, %arg2 : i32, i32
  }
  func.func @transform_1(%arg0: i32, %arg1: i32, %arg2: i32) -> (i32, i32) {
    %c0_i32 = arith.constant 0 : i32
    return %arg2, %arg1 : i32, i32
  }
  func.func @transform_2(%arg0: i32, %arg1: i32, %arg2: i32) -> (i32, i32) {
    %c0_i32 = arith.constant 0 : i32
    %c0_i32_0 = arith.constant 0 : i32
    return %c0_i32, %arg1 : i32, i32
  }
  func.func @transform_3(%arg0: i32, %arg1: i32, %arg2: i32) -> (i32, i32) {
    %c0_i32 = arith.constant 0 : i32
    return %arg0, %arg1 : i32, i32
  }
}

</mosaic_0001>

<llo_original>
// kernel: mom_attention_forward.5
$region0: #{mom_attention_forward.5}
  #allocation0 [shape = 'u32[]', space=smem, size = 0x4, offset = 0x4, fixed_abs, tag = 'smem constant byte address 0x4 - core index']
  #allocation1 [shape = 'u32[144,128]{1,0:T(1,128)}', space=vmem, size = 0x12000, scoped, tag = 'internal scratch']
  #allocation2 [shape = 'f32[32,128]{1,0:T(8,128)}', space=vmem, size = 0x4000, scoped, tag = 'scratch operand']
  %s0 = inlined_call_operand.vmem [shape: bf16[32,128], index: 0, kind: input, shape index: {}]
  %s1 = inlined_call_operand.vmem [shape: bf16[128,128], index: 1, kind: input, shape index: {}]
  %s2 = inlined_call_operand.vmem [shape: f32[1,128], index: 2, kind: input, shape index: {}]
  %s3 = inlined_call_operand.hbm [shape: f32[32,128], index: 3, kind: output, shape index: {}]
  %s4 = sld [smem:[#allocation0]]
  $region30: #{mom_attention_forward.5} parent=0
    _
  %s6 = ssub.s32 1, %s4
  %s7 = scalar_select 0, %s6, %s4
  $region1: #{mom_attention_forward.5} parent=0
    #allocation3 [shape = 'u8[16384]{0}', space=vmem, size = 0x4000, scoped, tag = 'output window, operand 0, single buffered']
    #allocation4 [shape = 's32[1]{0}', space=sflag, size = 0x4, scoped, tag = 'scoped memory for mom_attention_forward.5']
    %8 = vsyncpa [#allocation4], 0
    // Predicated region
    $region2: #{mom_attention_forward.5} parent=1 // pred_check
      _
    $region3: #{mom_attention_forward.5} parent=1 // pred_check_branch
      %10 = sbr.rel (0) target = $region5
    $region4: #{mom_attention_forward.5} parent=1 // pred_region
      _
    $region5: #{mom_attention_forward.5} parent=1 // pred_fallthru
      _
    // Predicated region
    $region6: #{mom_attention_forward.5} parent=1 // pred_check
      _
    $region7: #{mom_attention_forward.5} parent=1 // pred_check_branch
      %12 = sbr.rel (0) target = $region9
    $region8: #{mom_attention_forward.5} parent=1 // pred_region
      _
    $region9: #{mom_attention_forward.5} parent=1 // pred_fallthru
      _
    // Predicated region
    $region10: #{mom_attention_forward.5} parent=1 // pred_check
      _
    $region11: #{mom_attention_forward.5} parent=1 // pred_check_branch
      %14 = sbr.rel (0) target = $region13
    $region12: #{mom_attention_forward.5} parent=1 // pred_region
      _
    $region13: #{mom_attention_forward.5} parent=1 // pred_fallthru
      _
    %p16 = scmp.eq.s32.totalorder 0, 0
    // Predicated region
    $region14: #{mom_attention_forward.5} parent=1 // pred_check
      %p17 = pneg %p16
    $region15: #{mom_attention_forward.5} parent=1 // pred_check_branch
      %19 = sbr.rel (%p17) target = $region17
    $region16: #{mom_attention_forward.5} parent=1 // pred_region
      %20 = vst [vmem:[#allocation2] sm:$0xff] 0.0
      %21 = vst [vmem:[#allocation2 + $0x8] sm:$0xff] 0.0
      %22 = vst [vmem:[#allocation2 + $0x10] sm:$0xff] 0.0
      %23 = vst [vmem:[#allocation2 + $0x18] sm:$0xff] 0.0
    $region17: #{mom_attention_forward.5} parent=1 // pred_fallthru
      _
    %v24 = vld [vmem:[#allocation2] sm:$0xff]
    %v25 = vld [vmem:[#allocation2 + $0x8] sm:$0xff]
    %v26 = vld [vmem:[#allocation2 + $0x10] sm:$0xff]
    %v27 = vld [vmem:[#allocation2 + $0x18] sm:$0xff]
    %v28 = vld [vmem:[%s0] sm:$0xf]
    %v29 = vld [vmem:[%s0 + $0x4] sm:$0xf]
    %v30 = vld [vmem:[%s0 + $0x8] sm:$0xf]
    %v31 = vld [vmem:[%s0 + $0xc] sm:$0xf]
    %v32 = vld [vmem:[%s1] sm:$0xf]
    %v33 = vld [vmem:[%s1 + $0x4] sm:$0xf]
    %v34 = vld [vmem:[%s1 + $0x8] sm:$0xf]
    %v35 = vld [vmem:[%s1 + $0xc] sm:$0xf]
    %v36 = vld [vmem:[%s1 + $0x10] sm:$0xf]
    %v37 = vld [vmem:[%s1 + $0x14] sm:$0xf]
    %v38 = vld [vmem:[%s1 + $0x18] sm:$0xf]
    %v39 = vld [vmem:[%s1 + $0x1c] sm:$0xf]
    %v40 = vld [vmem:[%s1 + $0x20] sm:$0xf]
    %v41 = vld [vmem:[%s1 + $0x24] sm:$0xf]
    %v42 = vld [vmem:[%s1 + $0x28] sm:$0xf]
    %v43 = vld [vmem:[%s1 + $0x2c] sm:$0xf]
    %v44 = vld [vmem:[%s1 + $0x30] sm:$0xf]
    %v45 = vld [vmem:[%s1 + $0x34] sm:$0xf]
    %v46 = vld [vmem:[%s1 + $0x38] sm:$0xf]
    %v47 = vld [vmem:[%s1 + $0x3c] sm:$0xf]
    %v52 = vunpack.c.l.b16 %v28
    %v53 = vunpack.c.l.b16 %v29
    %v54 = vunpack.c.l.b16 %v30
    %v55 = vunpack.c.l.b16 %v31
    %v56 = vpack.c.b16 %v53, %v52
    %v57 = vpack.c.b16 %v55, %v54
    %v76 = vunpack.c.l.b16 %v32
    %v77 = vunpack.c.l.b16 %v33
    %v78 = vunpack.c.l.b16 %v34
    %v79 = vunpack.c.l.b16 %v35
    %v80 = vunpack.c.l.b16 %v36
    %v81 = vunpack.c.l.b16 %v37
    %v82 = vunpack.c.l.b16 %v38
    %v83 = vunpack.c.l.b16 %v39
    %v84 = vunpack.c.l.b16 %v40
    %v85 = vunpack.c.l.b16 %v41
    %v86 = vunpack.c.l.b16 %v42
    %v87 = vunpack.c.l.b16 %v43
    %v88 = vunpack.c.l.b16 %v44
    %v89 = vunpack.c.l.b16 %v45
    %v90 = vunpack.c.l.b16 %v46
    %v91 = vunpack.c.l.b16 %v47
    %v92 = vpack.c.b16 %v77, %v76
    %v93 = vpack.c.b16 %v79, %v78
    %v94 = vpack.c.b16 %v81, %v80
    %v95 = vpack.c.b16 %v83, %v82
    %v96 = vpack.c.b16 %v85, %v84
    %v97 = vpack.c.b16 %v87, %v86
    %v98 = vpack.c.b16 %v89, %v88
    %v99 = vpack.c.b16 %v91, %v90
    %108 = vmatprep.subr.bf16.mxu0 0
    %109 = vmatpush1.bf16.msra.mxu0 %v99
    %110 = vmatprep.subr.bf16.mxu0 0
    %111 = vmatpush1.bf16.msra.mxu0 %v98
    %112 = vmatprep.subr.bf16.mxu0 0
    %113 = vmatpush1.bf16.msra.mxu0 %v97
    %114 = vmatprep.subr.bf16.mxu0 0
    %115 = vmatpush1.bf16.msra.mxu0 %v96
    %116 = vmatprep.subr.bf16.mxu0 0
    %117 = vmatpush1.bf16.msra.mxu0 %v95
    %118 = vmatprep.subr.bf16.mxu0 0
    %119 = vmatpush1.bf16.msra.mxu0 %v94
    %120 = vmatprep.subr.bf16.mxu0 0
    %121 = vmatpush1.bf16.msra.mxu0 %v93
    %122 = vmatprep.subr.bf16.mxu0 0
    %123 = vmatpush1.bf16.msra.mxu0 %v92
    %124 = vmatprep.subr.bf16.mxu0 0
    %125 = vmatpush2.bf16.msra.mxu0 0
    %126 = vmatprep.subr.bf16.mxu0 0
    %127 = vmatpush2.bf16.msra.mxu0 0
    %128 = vmatprep.subr.bf16.mxu0 0
    %129 = vmatpush2.bf16.msra.mxu0 0
    %130 = vmatprep.subr.bf16.mxu0 0
    %131 = vmatpush2.bf16.msra.mxu0 0
    %132 = vmatprep.subr.bf16.mxu0 0
    %133 = vmatpush2.bf16.msra.mxu0 0
    %134 = vmatprep.subr.bf16.mxu0 0
    %135 = vmatpush2.bf16.msra.mxu0 0
    %136 = vmatprep.subr.bf16.mxu0 0
    %137 = vmatpush2.bf16.msra.mxu0 0
    %138 = vmatprep.subr.bf16.mxu0 0
    %139 = vmatpush2.bf16.msra.mxu0 0
    %140 = vmatprep.mubr.bf16.mxu0 0
    %141 = vmatmul.mubr.bf16.gmra.mxu0 %v56
    %v142 = vpop.f32.mrf.mxu0
    %v143 = vadd.f32 0.0, %v142
    %v144 = vpop.f32.mrf.mxu0
    %v145 = vpop.f32.mrf.mxu0
    %v146 = vadd.f32 0.0, %v145
    %v147 = vpop.f32.mrf.mxu0
    %148 = vmatprep.mubr.bf16.mxu0 0
    %149 = vmatmul.mubr.bf16.gmra.mxu0 %v57
    %v150 = vpop.f32.mrf.mxu0
    %v151 = vadd.f32 0.0, %v150
    %v152 = vpop.f32.mrf.mxu0
    %v153 = vpop.f32.mrf.mxu0
    %v154 = vadd.f32 0.0, %v153
    %v155 = vpop.f32.mrf.mxu0
    %156 = vdwg.mxu0
    %v157 = vadd.f32 %v24, %v143
    %v158 = vadd.f32 %v25, %v146
    %v159 = vadd.f32 %v26, %v151
    %v160 = vadd.f32 %v27, %v154
    %161 = vst [vmem:[#allocation2] sm:$0xff] %v157
    %162 = vst [vmem:[#allocation2 + $0x8] sm:$0xff] %v158
    %163 = vst [vmem:[#allocation2 + $0x10] sm:$0xff] %v159
    %164 = vst [vmem:[#allocation2 + $0x18] sm:$0xff] %v160
    // Predicated region
    $region18: #{mom_attention_forward.5} parent=1 // pred_check
      %p165 = pneg %p16
    $region19: #{mom_attention_forward.5} parent=1 // pred_check_branch
      %167 = sbr.rel (%p165) target = $region21
    $region20: #{mom_attention_forward.5} parent=1 // pred_region
      %v168 = vld [vmem:[#allocation2] sm:$0xff]
      %v169 = vld [vmem:[#allocation2 + $0x8] sm:$0xff]
      %v170 = vld [vmem:[#allocation2 + $0x10] sm:$0xff]
      %v171 = vld [vmem:[#allocation2 + $0x18] sm:$0xff]
      %v172 = vld [vmem:[%s2] sm:$0x1]
      %v174 = vlaneseq
      %v175 = vshrl.u32 %v174, 7
      %v176 = vsub.s32 0, %v175
      %v177 = vrot.slane %v172, %v176
      %v179 = vadd.f32 %v168, %v177
      %v180 = vadd.f32 %v169, %v177
      %v181 = vadd.f32 %v170, %v177
      %v182 = vadd.f32 %v171, %v177
      %183 = vst [vmem:[#allocation3] sm:$0xff] %v179
      %184 = vst [vmem:[#allocation3 + $0x8] sm:$0xff] %v180
      %185 = vst [vmem:[#allocation3 + $0x10] sm:$0xff] %v181
      %186 = vst [vmem:[#allocation3 + $0x18] sm:$0xff] %v182
    $region21: #{mom_attention_forward.5} parent=1 // pred_fallthru
      _
    // Predicated region
    $region22: #{mom_attention_forward.5} parent=1 // pred_check
      _
    $region23: #{mom_attention_forward.5} parent=1 // pred_check_branch
      %188 = sbr.rel (0) target = $region25
    $region24: #{mom_attention_forward.5} parent=1 // pred_region
      %s190 = ssub.s32 512, 512
      %191 = vsyncadd [#allocation4], %s190
      %s192 = sshll.u32 [#allocation3], 4
      %s193 = int_to_ptr.vmem [resolvable:$true] %s192
      %198 = dma.vmem_to_hbm [thread:$0]  %s193, 512, %s3, [#allocation4], 128, 128, 8
    $region25: #{mom_attention_forward.5} parent=1 // pred_fallthru
      _
    // Predicated region
    $region26: #{mom_attention_forward.5} parent=1 // pred_check
      _
    $region27: #{mom_attention_forward.5} parent=1 // pred_check_branch
      %200 = sbr.rel (0) target = $region29
    $region28: #{mom_attention_forward.5} parent=1 // pred_region
      %201 = dma.done [#allocation4], 512
    $region29: #{mom_attention_forward.5} parent=1 // pred_fallthru
      _
    %202 = vsyncpa [#allocation4], 1

// kernel: mom_attention_forward.3
$region0: #{mom_attention_forward.3}
  #allocation0 [shape = 'u32[]', space=smem, size = 0x4, offset = 0x4, fixed_abs, tag = 'smem constant byte address 0x4 - core index']
  #allocation1 [shape = 'u32[144,128]{1,0:T(1,128)}', space=vmem, size = 0x12000, scoped, tag = 'internal scratch']
  #allocation2 [shape = 'f32[32,128]{1,0:T(8,128)}', space=vmem, size = 0x4000, scoped, tag = 'scratch operand']
  %s0 = inlined_call_operand.vmem [shape: bf16[32,128], index: 0, kind: input, shape index: {}]
  %s1 = inlined_call_operand.vmem [shape: bf16[128,128], index: 1, kind: input, shape index: {}]
  %s2 = inlined_call_operand.vmem [shape: f32[1,128], index: 2, kind: input, shape index: {}]
  %s3 = inlined_call_operand.vmem [shape: f32[32,128], index: 3, kind: output, shape index: {}]
  %s4 = sld [smem:[#allocation0]]
  $region30: #{mom_attention_forward.3} parent=0
    _
  %s6 = ssub.s32 1, %s4
  %s7 = scalar_select 0, %s6, %s4
  // Predicated region
  $region2: #{mom_attention_forward.3} parent=0 // pred_check
    _
  $region3: #{mom_attention_forward.3} parent=0 // pred_check_branch
    %9 = sbr.rel (0) target = $region5
  $region4: #{mom_attention_forward.3} parent=0 // pred_region
    _
  $region5: #{mom_attention_forward.3} parent=0 // pred_fallthru
    _
  // Predicated region
  $region6: #{mom_attention_forward.3} parent=0 // pred_check
    _
  $region7: #{mom_attention_forward.3} parent=0 // pred_check_branch
    %11 = sbr.rel (0) target = $region9
  $region8: #{mom_attention_forward.3} parent=0 // pred_region
    _
  $region9: #{mom_attention_forward.3} parent=0 // pred_fallthru
    _
  // Predicated region
  $region10: #{mom_attention_forward.3} parent=0 // pred_check
    _
  $region11: #{mom_attention_forward.3} parent=0 // pred_check_branch
    %13 = sbr.rel (0) target = $region13
  $region12: #{mom_attention_forward.3} parent=0 // pred_region
    _
  $region13: #{mom_attention_forward.3} parent=0 // pred_fallthru
    _
  %p15 = scmp.eq.s32.totalorder 0, 0
  // Predicated region
  $region14: #{mom_attention_forward.3} parent=0 // pred_check
    %p16 = pneg %p15
  $region15: #{mom_attention_forward.3} parent=0 // pred_check_branch
    %18 = sbr.rel (%p16) target = $region17
  $region16: #{mom_attention_forward.3} parent=0 // pred_region
    %19 = vst [vmem:[#allocation2] sm:$0xff] 0.0
    %20 = vst [vmem:[#allocation2 + $0x8] sm:$0xff] 0.0
    %21 = vst [vmem:[#allocation2 + $0x10] sm:$0xff] 0.0
    %22 = vst [vmem:[#allocation2 + $0x18] sm:$0xff] 0.0
  $region17: #{mom_attention_forward.3} parent=0 // pred_fallthru
    _
  %v23 = vld [vmem:[#allocation2] sm:$0xff]
  %v24 = vld [vmem:[#allocation2 + $0x8] sm:$0xff]
  %v25 = vld [vmem:[#allocation2 + $0x10] sm:$0xff]
  %v26 = vld [vmem:[#allocation2 + $0x18] sm:$0xff]
  %v27 = vld [vmem:[%s0] sm:$0xf]
  %v28 = vld [vmem:[%s0 + $0x4] sm:$0xf]
  %v29 = vld [vmem:[%s0 + $0x8] sm:$0xf]
  %v30 = vld [vmem:[%s0 + $0xc] sm:$0xf]
  %v31 = vld [vmem:[%s1] sm:$0xf]
  %v32 = vld [vmem:[%s1 + $0x4] sm:$0xf]
  %v33 = vld [vmem:[%s1 + $0x8] sm:$0xf]
  %v34 = vld [vmem:[%s1 + $0xc] sm:$0xf]
  %v35 = vld [vmem:[%s1 + $0x10] sm:$0xf]
  %v36 = vld [vmem:[%s1 + $0x14] sm:$0xf]
  %v37 = vld [vmem:[%s1 + $0x18] sm:$0xf]
  %v38 = vld [vmem:[%s1 + $0x1c] sm:$0xf]
  %v39 = vld [vmem:[%s1 + $0x20] sm:$0xf]
  %v40 = vld [vmem:[%s1 + $0x24] sm:$0xf]
  %v41 = vld [vmem:[%s1 + $0x28] sm:$0xf]
  %v42 = vld [vmem:[%s1 + $0x2c] sm:$0xf]
  %v43 = vld [vmem:[%s1 + $0x30] sm:$0xf]
  %v44 = vld [vmem:[%s1 + $0x34] sm:$0xf]
  %v45 = vld [vmem:[%s1 + $0x38] sm:$0xf]
  %v46 = vld [vmem:[%s1 + $0x3c] sm:$0xf]
  %v51 = vunpack.c.l.b16 %v27
  %v52 = vunpack.c.l.b16 %v28
  %v53 = vunpack.c.l.b16 %v29
  %v54 = vunpack.c.l.b16 %v30
  %v55 = vpack.c.b16 %v52, %v51
  %v56 = vpack.c.b16 %v54, %v53
  %v75 = vunpack.c.l.b16 %v31
  %v76 = vunpack.c.l.b16 %v32
  %v77 = vunpack.c.l.b16 %v33
  %v78 = vunpack.c.l.b16 %v34
  %v79 = vunpack.c.l.b16 %v35
  %v80 = vunpack.c.l.b16 %v36
  %v81 = vunpack.c.l.b16 %v37
  %v82 = vunpack.c.l.b16 %v38
  %v83 = vunpack.c.l.b16 %v39
  %v84 = vunpack.c.l.b16 %v40
  %v85 = vunpack.c.l.b16 %v41
  %v86 = vunpack.c.l.b16 %v42
  %v87 = vunpack.c.l.b16 %v43
  %v88 = vunpack.c.l.b16 %v44
  %v89 = vunpack.c.l.b16 %v45
  %v90 = vunpack.c.l.b16 %v46
  %v91 = vpack.c.b16 %v76, %v75
  %v92 = vpack.c.b16 %v78, %v77
  %v93 = vpack.c.b16 %v80, %v79
  %v94 = vpack.c.b16 %v82, %v81
  %v95 = vpack.c.b16 %v84, %v83
  %v96 = vpack.c.b16 %v86, %v85
  %v97 = vpack.c.b16 %v88, %v87
  %v98 = vpack.c.b16 %v90, %v89
  %107 = vmatprep.subr.bf16.mxu0 0
  %108 = vmatpush1.bf16.msra.mxu0 %v98
  %109 = vmatprep.subr.bf16.mxu0 0
  %110 = vmatpush1.bf16.msra.mxu0 %v97
  %111 = vmatprep.subr.bf16.mxu0 0
  %112 = vmatpush1.bf16.msra.mxu0 %v96
  %113 = vmatprep.subr.bf16.mxu0 0
  %114 = vmatpush1.bf16.msra.mxu0 %v95
  %115 = vmatprep.subr.bf16.mxu0 0
  %116 = vmatpush1.bf16.msra.mxu0 %v94
  %117 = vmatprep.subr.bf16.mxu0 0
  %118 = vmatpush1.bf16.msra.mxu0 %v93
  %119 = vmatprep.subr.bf16.mxu0 0
  %120 = vmatpush1.bf16.msra.mxu0 %v92
  %121 = vmatprep.subr.bf16.mxu0 0
  %122 = vmatpush1.bf16.msra.mxu0 %v91
  %123 = vmatprep.subr.bf16.mxu0 0
  %124 = vmatpush2.bf16.msra.mxu0 0
  %125 = vmatprep.subr.bf16.mxu0 0
  %126 = vmatpush2.bf16.msra.mxu0 0
  %127 = vmatprep.subr.bf16.mxu0 0
  %128 = vmatpush2.bf16.msra.mxu0 0
  %129 = vmatprep.subr.bf16.mxu0 0
  %130 = vmatpush2.bf16.msra.mxu0 0
  %131 = vmatprep.subr.bf16.mxu0 0
  %132 = vmatpush2.bf16.msra.mxu0 0
  %133 = vmatprep.subr.bf16.mxu0 0
  %134 = vmatpush2.bf16.msra.mxu0 0
  %135 = vmatprep.subr.bf16.mxu0 0
  %136 = vmatpush2.bf16.msra.mxu0 0
  %137 = vmatprep.subr.bf16.mxu0 0
  %138 = vmatpush2.bf16.msra.mxu0 0
  %139 = vmatprep.mubr.bf16.mxu0 0
  %140 = vmatmul.mubr.bf16.gmra.mxu0 %v55
  %v141 = vpop.f32.mrf.mxu0
  %v142 = vadd.f32 0.0, %v141
  %v143 = vpop.f32.mrf.mxu0
  %v144 = vpop.f32.mrf.mxu0
  %v145 = vadd.f32 0.0, %v144
  %v146 = vpop.f32.mrf.mxu0
  %147 = vmatprep.mubr.bf16.mxu0 0
  %148 = vmatmul.mubr.bf16.gmra.mxu0 %v56
  %v149 = vpop.f32.mrf.mxu0
  %v150 = vadd.f32 0.0, %v149
  %v151 = vpop.f32.mrf.mxu0
  %v152 = vpop.f32.mrf.mxu0
  %v153 = vadd.f32 0.0, %v152
  %v154 = vpop.f32.mrf.mxu0
  %155 = vdwg.mxu0
  %v156 = vadd.f32 %v23, %v142
  %v157 = vadd.f32 %v24, %v145
  %v158 = vadd.f32 %v25, %v150
  %v159 = vadd.f32 %v26, %v153
  %160 = vst [vmem:[#allocation2] sm:$0xff] %v156
  %161 = vst [vmem:[#allocation2 + $0x8] sm:$0xff] %v157
  %162 = vst [vmem:[#allocation2 + $0x10] sm:$0xff] %v158
  %163 = vst [vmem:[#allocation2 + $0x18] sm:$0xff] %v159
  // Predicated region
  $region18: #{mom_attention_forward.3} parent=0 // pred_check
    %p164 = pneg %p15
  $region19: #{mom_attention_forward.3} parent=0 // pred_check_branch
    %166 = sbr.rel (%p164) target = $region21
  $region20: #{mom_attention_forward.3} parent=0 // pred_region
    %v167 = vld [vmem:[#allocation2] sm:$0xff]
    %v168 = vld [vmem:[#allocation2 + $0x8] sm:$0xff]
    %v169 = vld [vmem:[#allocation2 + $0x10] sm:$0xff]
    %v170 = vld [vmem:[#allocation2 + $0x18] sm:$0xff]
    %v171 = vld [vmem:[%s2] sm:$0x1]
    %v173 = vlaneseq
    %v174 = vshrl.u32 %v173, 7
    %v175 = vsub.s32 0, %v174
    %v176 = vrot.slane %v171, %v175
    %v178 = vadd.f32 %v167, %v176
    %v179 = vadd.f32 %v168, %v176
    %v180 = vadd.f32 %v169, %v176
    %v181 = vadd.f32 %v170, %v176
    %182 = vst [vmem:[%s3] sm:$0xff] %v178
    %183 = vst [vmem:[%s3 + $0x8] sm:$0xff] %v179
    %184 = vst [vmem:[%s3 + $0x10] sm:$0xff] %v180
    %185 = vst [vmem:[%s3 + $0x18] sm:$0xff] %v181
  $region21: #{mom_attention_forward.3} parent=0 // pred_fallthru
    _
  // Predicated region
  $region22: #{mom_attention_forward.3} parent=0 // pred_check
    _
  $region23: #{mom_attention_forward.3} parent=0 // pred_check_branch
    %187 = sbr.rel (0) target = $region25
  $region24: #{mom_attention_forward.3} parent=0 // pred_region
    _
  $region25: #{mom_attention_forward.3} parent=0 // pred_fallthru
    _
  // Predicated region
  $region26: #{mom_attention_forward.3} parent=0 // pred_check
    _
  $region27: #{mom_attention_forward.3} parent=0 // pred_check_branch
    %189 = sbr.rel (0) target = $region29
  $region28: #{mom_attention_forward.3} parent=0 // pred_region
    _
  $region29: #{mom_attention_forward.3} parent=0 // pred_fallthru
    _

// kernel: mom_attention_forward.4
$region0: #{mom_attention_forward.4}
  #allocation0 [shape = 'u32[]', space=smem, size = 0x4, offset = 0x4, fixed_abs, tag = 'smem constant byte address 0x4 - core index']
  #allocation1 [shape = 'u32[144,128]{1,0:T(1,128)}', space=vmem, size = 0x12000, scoped, tag = 'internal scratch']
  #allocation2 [shape = 'f32[16,1]{1,0:T(8,128)}', space=vmem, size = 0x2000, scoped, tag = 'scratch operand']
  #allocation3 [shape = 'f32[16,1]{1,0:T(8,128)}', space=vmem, size = 0x2000, scoped, tag = 'scratch operand']
  #allocation4 [shape = 'f32[16,8]{1,0:T(8,128)}', space=vmem, size = 0x2000, scoped, tag = 'scratch operand']
  %s0 = inlined_call_operand.vmem [shape: bf16[8,16,8], index: 0, kind: input, shape index: {}]
  %s1 = inlined_call_operand.vmem [shape: bf16[8,128,8], index: 1, kind: input, shape index: {}]
  %s2 = inlined_call_operand.vmem [shape: bf16[8,128,8], index: 2, kind: input, shape index: {}]
  %s3 = inlined_call_operand.vmem [shape: f32[1,128], index: 3, kind: input, shape index: {}]
  %s4 = inlined_call_operand.vmem [shape: bf16[8,16,8], index: 4, kind: output, shape index: {}]
  %s5 = sld [smem:[#allocation0]]
  $region57: #{mom_attention_forward.4} parent=0
    _
  %s7 = ssub.s32 1, %s5
  %s8 = scalar_select 0, %s7, %s5
  loop: start=0, step=1, limit=10
  $region2: #{mom_attention_forward.4} parent=0 // loop_pre_header
    _
  $region3: #{mom_attention_forward.4} parent=0 // loop_header
    %s10 = sphi 0, %s14
    %p11 = scmp.ge.s32.totalorder %s10, 10
    %s17 = sphi 0, %s36
    %s18 = sphi 0, %s32
    %s19 = sphi 0, %s28
    %s20 = sphi 0, %s17
    %s21 = sphi 0, %s18
    %s22 = sphi 0, %s19
    %s23 = sphi 0, %s20
    %s24 = sphi 0, %s21
    %s25 = sphi 0, %s22
    %s41 = sphi 0, %s43
    %s44 = sphi 0, %s41
    %s45 = sphi 0, %s44
    %s61 = sphi 0, %s45
    %s69 = sphi 0, %s71
    %s72 = sphi 0, %s69
    %s73 = sphi 0, %s72
    %s89 = sphi 0, %s73
    %s97 = sphi 0, %s99
    %s100 = sphi 0, %s97
    %s101 = sphi 0, %s100
    %s117 = sphi 0, %s101
    %s123 = sphi 0, %s125
    %s126 = sphi 0, %s123
    %s127 = sphi 0, %s126
    %s143 = sphi 0, %s127
    %s151 = sphi 0, %s153
    %s154 = sphi 0, %s151
    %s155 = sphi 0, %s154
    %s171 = sphi 0, %s155
  $region4: #{mom_attention_forward.4} parent=0 // loop_header_branch
    %13 = sbr.rel (%p11) target = $region8
  $region5: #{mom_attention_forward.4} parent=0 // loop_body
    %s15 = ssub.s32 %s10, 1
    %s16 = ssub.s32 %s10, 2
    %s26 = sadd.s32 1, %s19
    %p27 = scmp.ge.s32.totalorder %s26, 1
    %s28 = scalar_select %p27, 0, %s26
    %s29 = sadd.s32 1, %s18
    %s30 = scalar_select %p27, %s29, %s18
    %p31 = scmp.ge.s32.totalorder %s30, 1
    %s32 = scalar_select %p31, 0, %s30
    %s33 = sadd.s32 1, %s17
    %s34 = scalar_select %p31, %s33, %s17
    %p35 = scmp.ge.s32.totalorder %s34, 8
    %s36 = scalar_select %p35, 0, %s34
    %s37 = ssub.s32 %s17, %s36
    %s38 = ssub.s32 %s18, %s32
    %s39 = sor.u32 %s37, %s38
    %p40 = scmp.eq.s32.totalorder %s39, 0
    %s42 = sadd.s32 %s41, 1
    %s43 = scalar_select %p40, %s41, %s42
    %p46 = pneg %p40
    %p47 = scmp.eq.s32.totalorder %s10, 7
    %p48 = por %p46, %p47
    %p49 = scmp.ne.s32.totalorder %s41, %s44
    %p50 = scmp.eq.s32.totalorder %s10, 0
    %p51 = por %p49, %p50
    %p52 = scmp.ne.s32.totalorder %s41, %s44
    %p53 = scmp.eq.s32.totalorder %s15, 7
    %p54 = por %p52, %p53
    %p55 = scmp.ne.s32.totalorder %s44, %s45
    %p56 = scmp.eq.s32.totalorder %s15, 0
    %p57 = por %p55, %p56
    %p58 = scmp.ne.s32.totalorder %s44, %s45
    %p59 = scmp.eq.s32.totalorder %s16, 7
    %p60 = por %p58, %p59
    %p62 = scmp.ne.s32.totalorder %s45, %s61
    %p63 = scmp.eq.s32.totalorder %s16, 0
    %p64 = por %p62, %p63
    %s65 = ssub.s32 %s17, %s36
    %s66 = ssub.s32 %s19, %s28
    %s67 = sor.u32 %s65, %s66
    %p68 = scmp.eq.s32.totalorder %s67, 0
    %s70 = sadd.s32 %s69, 1
    %s71 = scalar_select %p68, %s69, %s70
    %p74 = pneg %p68
    %p75 = scmp.eq.s32.totalorder %s10, 7
    %p76 = por %p74, %p75
    %p77 = scmp.ne.s32.totalorder %s69, %s72
    %p78 = scmp.eq.s32.totalorder %s10, 0
    %p79 = por %p77, %p78
    %p80 = scmp.ne.s32.totalorder %s69, %s72
    %p81 = scmp.eq.s32.totalorder %s15, 7
    %p82 = por %p80, %p81
    %p83 = scmp.ne.s32.totalorder %s72, %s73
    %p84 = scmp.eq.s32.totalorder %s15, 0
    %p85 = por %p83, %p84
    %p86 = scmp.ne.s32.totalorder %s72, %s73
    %p87 = scmp.eq.s32.totalorder %s16, 7
    %p88 = por %p86, %p87
    %p90 = scmp.ne.s32.totalorder %s73, %s89
    %p91 = scmp.eq.s32.totalorder %s16, 0
    %p92 = por %p90, %p91
    %s93 = ssub.s32 %s17, %s36
    %s94 = ssub.s32 %s19, %s28
    %s95 = sor.u32 %s93, %s94
    %p96 = scmp.eq.s32.totalorder %s95, 0
    %s98 = sadd.s32 %s97, 1
    %s99 = scalar_select %p96, %s97, %s98
    %p102 = pneg %p96
    %p103 = scmp.eq.s32.totalorder %s10, 7
    %p104 = por %p102, %p103
    %p105 = scmp.ne.s32.totalorder %s97, %s100
    %p106 = scmp.eq.s32.totalorder %s10, 0
    %p107 = por %p105, %p106
    %p108 = scmp.ne.s32.totalorder %s97, %s100
    %p109 = scmp.eq.s32.totalorder %s15, 7
    %p110 = por %p108, %p109
    %p111 = scmp.ne.s32.totalorder %s100, %s101
    %p112 = scmp.eq.s32.totalorder %s15, 0
    %p113 = por %p111, %p112
    %p114 = scmp.ne.s32.totalorder %s100, %s101
    %p115 = scmp.eq.s32.totalorder %s16, 7
    %p116 = por %p114, %p115
    %p118 = scmp.ne.s32.totalorder %s101, %s117
    %p119 = scmp.eq.s32.totalorder %s16, 0
    %p120 = por %p118, %p119
    %s121 = ssub.s32 %s19, %s28
    %p122 = scmp.eq.s32.totalorder %s121, 0
    %s124 = sadd.s32 %s123, 1
    %s125 = scalar_select %p122, %s123, %s124
    %p128 = pneg %p122
    %p129 = scmp.eq.s32.totalorder %s10, 7
    %p130 = por %p128, %p129
    %p131 = scmp.ne.s32.totalorder %s123, %s126
    %p132 = scmp.eq.s32.totalorder %s10, 0
    %p133 = por %p131, %p132
    %p134 = scmp.ne.s32.totalorder %s123, %s126
    %p135 = scmp.eq.s32.totalorder %s15, 7
    %p136 = por %p134, %p135
    %p137 = scmp.ne.s32.totalorder %s126, %s127
    %p138 = scmp.eq.s32.totalorder %s15, 0
    %p139 = por %p137, %p138
    %p140 = scmp.ne.s32.totalorder %s126, %s127
    %p141 = scmp.eq.s32.totalorder %s16, 7
    %p142 = por %p140, %p141
    %p144 = scmp.ne.s32.totalorder %s127, %s143
    %p145 = scmp.eq.s32.totalorder %s16, 0
    %p146 = por %p144, %p145
    %s147 = ssub.s32 %s17, %s36
    %s148 = ssub.s32 %s18, %s32
    %s149 = sor.u32 %s147, %s148
    %p150 = scmp.eq.s32.totalorder %s149, 0
    %s152 = sadd.s32 %s151, 1
    %s153 = scalar_select %p150, %s151, %s152
    %p156 = pneg %p150
    %p157 = scmp.eq.s32.totalorder %s10, 7
    %p158 = por %p156, %p157
    %p159 = scmp.ne.s32.totalorder %s151, %s154
    %p160 = scmp.eq.s32.totalorder %s10, 0
    %p161 = por %p159, %p160
    %p162 = scmp.ne.s32.totalorder %s151, %s154
    %p163 = scmp.eq.s32.totalorder %s15, 7
    %p164 = por %p162, %p163
    %p165 = scmp.ne.s32.totalorder %s154, %s155
    %p166 = scmp.eq.s32.totalorder %s15, 0
    %p167 = por %p165, %p166
    %p168 = scmp.ne.s32.totalorder %s154, %s155
    %p169 = scmp.eq.s32.totalorder %s16, 7
    %p170 = por %p168, %p169
    %p172 = scmp.ne.s32.totalorder %s155, %s171
    %p173 = scmp.eq.s32.totalorder %s16, 0
    %p174 = por %p172, %p173
    %p175 = scmp.le.s32.totalorder 1, %s10
    %p176 = scmp.lt.s32.totalorder %s10, 9
    %p177 = pnand %p175, %p176
    %p178 = pneg %p177
    // Predicated region
    $region9: #{mom_attention_forward.4} parent=5 // pred_check
      _
    $region10: #{mom_attention_forward.4} parent=5 // pred_check_branch
      %180 = sbr.rel (%p177) target = $region12
    $region11: #{mom_attention_forward.4} parent=5 // pred_region
      %s181 = ssub.s32 %s10, 1
      // Predicated region
      $region13: #{mom_attention_forward.4} parent=11 // pred_check
        %p182 = pneg %p139
      $region14: #{mom_attention_forward.4} parent=11 // pred_check_branch
        %184 = sbr.rel (%p182) target = $region16
      $region15: #{mom_attention_forward.4} parent=11 // pred_region
        %p185 = scmp.lt.s32.totalorder %s22, 0
        %s186 = scalar_select %p185, %s22, 0
        %s187 = scalar_lea.vmem %s3, %s186
      $region16: #{mom_attention_forward.4} parent=11 // pred_fallthru
        _
    $region12: #{mom_attention_forward.4} parent=5 // pred_fallthru
      _
    %p188 = scmp.lt.s32.totalorder %s10, 8
    // Predicated region
    $region17: #{mom_attention_forward.4} parent=5 // pred_check
      %p189 = pneg %p188
    $region18: #{mom_attention_forward.4} parent=5 // pred_check_branch
      %191 = sbr.rel (%p189) target = $region20
    $region19: #{mom_attention_forward.4} parent=5 // pred_region
      // Predicated region
      $region21: #{mom_attention_forward.4} parent=19 // pred_check
        %p192 = pneg %p51
      $region22: #{mom_attention_forward.4} parent=19 // pred_check_branch
        %194 = sbr.rel (%p192) target = $region24
      $region23: #{mom_attention_forward.4} parent=19 // pred_region
        %s195 = smul.u32 2, %s18
        %p196 = scmp.lt.s32.totalorder %s17, 7
        %s197 = scalar_select %p196, %s17, 7
        %p198 = scmp.lt.s32.totalorder %s195, 1
        %s199 = scalar_select %p198, %s195, 1
        %s200 = smul.addr %s197, 2
        %s201 = sadd.s32 %s199, %s200
        %s202 = smul.addr %s201, 4
        %s203 = scalar_lea.vmem %s0, %s202
        %s204 = smul.u32 2, %s18
      $region24: #{mom_attention_forward.4} parent=19 // pred_fallthru
        _
      // Predicated region
      $region25: #{mom_attention_forward.4} parent=19 // pred_check
        %p205 = pneg %p79
      $region26: #{mom_attention_forward.4} parent=19 // pred_check_branch
        %207 = sbr.rel (%p205) target = $region28
      $region27: #{mom_attention_forward.4} parent=19 // pred_region
        %s208 = smul.u32 16, %s19
        %p209 = scmp.lt.s32.totalorder %s17, 7
        %s210 = scalar_select %p209, %s17, 7
        %p211 = scmp.lt.s32.totalorder %s208, 15
        %s212 = scalar_select %p211, %s208, 15
        %s213 = smul.addr %s210, 16
        %s214 = sadd.s32 %s212, %s213
        %s215 = smul.addr %s214, 4
        %s216 = scalar_lea.vmem %s1, %s215
        %s217 = smul.u32 16, %s19
      $region28: #{mom_attention_forward.4} parent=19 // pred_fallthru
        _
      // Predicated region
      $region29: #{mom_attention_forward.4} parent=19 // pred_check
        %p218 = pneg %p107
      $region30: #{mom_attention_forward.4} parent=19 // pred_check_branch
        %220 = sbr.rel (%p218) target = $region32
      $region31: #{mom_attention_forward.4} parent=19 // pred_region
        %s221 = smul.u32 16, %s19
        %p222 = scmp.lt.s32.totalorder %s17, 7
        %s223 = scalar_select %p222, %s17, 7
        %p224 = scmp.lt.s32.totalorder %s221, 15
        %s225 = scalar_select %p224, %s221, 15
        %s226 = smul.addr %s223, 16
        %s227 = sadd.s32 %s225, %s226
        %s228 = smul.addr %s227, 4
        %s229 = scalar_lea.vmem %s2, %s228
        %s230 = smul.u32 16, %s19
      $region32: #{mom_attention_forward.4} parent=19 // pred_fallthru
        _
    $region20: #{mom_attention_forward.4} parent=5 // pred_fallthru
      _
    %p231 = scmp.le.s32.totalorder 1, %s10
    %p232 = scmp.lt.s32.totalorder %s10, 9
    %p233 = pnand %p231, %p232
    %p234 = pneg %p233
    // Predicated region
    $region33: #{mom_attention_forward.4} parent=5 // pred_check
      _
    $region34: #{mom_attention_forward.4} parent=5 // pred_check_branch
      %236 = sbr.rel (%p233) target = $region36
    $region35: #{mom_attention_forward.4} parent=5 // pred_region
      %s237 = ssub.s32 %s10, 1
      %s238 = smul.u32 2, %s21
      %p239 = scmp.lt.s32.totalorder %s20, 7
      %s240 = scalar_select %p239, %s20, 7
      %p241 = scmp.lt.s32.totalorder %s238, 1
      %s242 = scalar_select %p241, %s238, 1
      %s243 = smul.addr %s240, 2
      %s244 = sadd.s32 %s242, %s243
      %s245 = smul.addr %s244, 4
      %s246 = scalar_lea.vmem %s0, %s245
      %p247 = pneg %p57
      %p248 = pneg %p54
      %s249 = smul.u32 16, %s22
      %p250 = scmp.lt.s32.totalorder %s20, 7
      %s251 = scalar_select %p250, %s20, 7
      %p252 = scmp.lt.s32.totalorder %s249, 15
      %s253 = scalar_select %p252, %s249, 15
      %s254 = smul.addr %s251, 16
      %s255 = sadd.s32 %s253, %s254
      %s256 = smul.addr %s255, 4
      %s257 = scalar_lea.vmem %s1, %s256
      %p258 = pneg %p85
      %p259 = pneg %p82
      %s260 = smul.u32 16, %s22
      %p261 = scmp.lt.s32.totalorder %s20, 7
      %s262 = scalar_select %p261, %s20, 7
      %p263 = scmp.lt.s32.totalorder %s260, 15
      %s264 = scalar_select %p263, %s260, 15
      %s265 = smul.addr %s262, 16
      %s266 = sadd.s32 %s264, %s265
      %s267 = smul.addr %s266, 4
      %s268 = scalar_lea.vmem %s2, %s267
      %p269 = pneg %p113
      %p270 = pneg %p110
      %p271 = scmp.lt.s32.totalorder %s22, 0
      %s272 = scalar_select %p271, %s22, 0
      %s273 = scalar_lea.vmem %s3, %s272
      %p274 = pneg %p139
      %p275 = pneg %p136
      %p276 = pneg %p167
      %p277 = pneg %p164
      %s278 = smul.u32 2, %s21
      %p279 = scmp.lt.s32.totalorder %s20, 7
      %s280 = scalar_select %p279, %s20, 7
      %p281 = scmp.lt.s32.totalorder %s278, 1
      %s282 = scalar_select %p281, %s278, 1
      %s283 = smul.addr %s280, 2
      %s284 = sadd.s32 %s282, %s283
      %s285 = smul.addr %s284, 4
      %s286 = scalar_lea.vmem %s4, %s285
      %s287 = smul.u32 2, %s21
      %p288 = scmp.lt.s32.totalorder %s20, 7
      %s289 = scalar_select %p288, %s20, 7
      %p290 = scmp.lt.s32.totalorder %s287, 1
      %s291 = scalar_select %p290, %s287, 1
      %s292 = smul.addr %s289, 2
      %s293 = sadd.s32 %s291, %s292
      %s294 = smul.addr %s293, 4
      %s295 = scalar_lea.vmem %s0, %s294
      %s296 = smul.u32 2, %s21
      %s297 = smul.u32 16, %s22
      %p298 = scmp.lt.s32.totalorder %s20, 7
      %s299 = scalar_select %p298, %s20, 7
      %p300 = scmp.lt.s32.totalorder %s297, 15
      %s301 = scalar_select %p300, %s297, 15
      %s302 = smul.addr %s299, 16
      %s303 = sadd.s32 %s301, %s302
      %s304 = smul.addr %s303, 4
      %s305 = scalar_lea.vmem %s1, %s304
      %s306 = smul.u32 16, %s22
      %s307 = smul.u32 16, %s22
      %p308 = scmp.lt.s32.totalorder %s20, 7
      %s309 = scalar_select %p308, %s20, 7
      %p310 = scmp.lt.s32.totalorder %s307, 15
      %s311 = scalar_select %p310, %s307, 15
      %s312 = smul.addr %s309, 16
      %s313 = sadd.s32 %s311, %s312
      %s314 = smul.addr %s313, 4
      %s315 = scalar_lea.vmem %s2, %s314
      %s316 = smul.u32 16, %s22
      %p317 = scmp.lt.s32.totalorder %s22, 0
      %s318 = scalar_select %p317, %s22, 0
      %s319 = scalar_lea.vmem %s3, %s318
      %s320 = smul.u32 2, %s21
      %p321 = scmp.lt.s32.totalorder %s20, 7
      %s322 = scalar_select %p321, %s20, 7
      %p323 = scmp.lt.s32.totalorder %s320, 1
      %s324 = scalar_select %p323, %s320, 1
      %s325 = smul.addr %s322, 2
      %s326 = sadd.s32 %s324, %s325
      %s327 = smul.addr %s326, 4
      %s328 = scalar_lea.vmem %s4, %s327
      %s329 = smul.u32 2, %s21
      %p331 = scmp.eq.s32.totalorder %s22, 0
      // Predicated region
      $region37: #{mom_attention_forward.4} parent=35 // pred_check
        %p332 = pneg %p331
      $region38: #{mom_attention_forward.4} parent=35 // pred_check_branch
        %334 = sbr.rel (%p332) target = $region40
      $region39: #{mom_attention_forward.4} parent=35 // pred_region
        %vm335 = vcmask 7168
        %336 = vst.msk [vmem:[#allocation2] sm:$0xff] %vm335, -inf
        %337 = vst.msk [vmem:[#allocation2 + $0x8] sm:$0xff] %vm335, -inf
        %338 = vst.msk [vmem:[#allocation3] sm:$0xff] %vm335, 0.0
        %339 = vst.msk [vmem:[#allocation3 + $0x8] sm:$0xff] %vm335, 0.0
        %vm340 = vcmask 64512
        %341 = vst.msk [vmem:[#allocation4] sm:$0xff] %vm340, 0.0
        %342 = vst.msk [vmem:[#allocation4 + $0x8] sm:$0xff] %vm340, 0.0
      $region40: #{mom_attention_forward.4} parent=35 // pred_fallthru
        _
      %v343 = vld [vmem:[%s295] sm:$0xf]
      %v344 = vld [vmem:[%s295 + $0x4] sm:$0xf]
      %v345 = vld [vmem:[%s305] sm:$0xf]
      %v346 = vld [vmem:[%s305 + $0x4] sm:$0xf]
      %v347 = vld [vmem:[%s305 + $0x8] sm:$0xf]
      %v348 = vld [vmem:[%s305 + $0xc] sm:$0xf]
      %v349 = vld [vmem:[%s305 + $0x10] sm:$0xf]
      %v350 = vld [vmem:[%s305 + $0x14] sm:$0xf]
      %v351 = vld [vmem:[%s305 + $0x18] sm:$0xf]
      %v352 = vld [vmem:[%s305 + $0x1c] sm:$0xf]
      %v353 = vld [vmem:[%s305 + $0x20] sm:$0xf]
      %v354 = vld [vmem:[%s305 + $0x24] sm:$0xf]
      %v355 = vld [vmem:[%s305 + $0x28] sm:$0xf]
      %v356 = vld [vmem:[%s305 + $0x2c] sm:$0xf]
      %v357 = vld [vmem:[%s305 + $0x30] sm:$0xf]
      %v358 = vld [vmem:[%s305 + $0x34] sm:$0xf]
      %v359 = vld [vmem:[%s305 + $0x38] sm:$0xf]
      %v360 = vld [vmem:[%s305 + $0x3c] sm:$0xf]
      %v361 = vld [vmem:[%s319] sm:$0x1]
      %v363 = vlaneseq
      %v364 = vshrl.u32 %v363, 7
      %v365 = vsub.s32 0, %v364
      %v366 = vrot.slane %v361, %v365
      %v370 = vunpack.c.l.b16 %v343
      %v371 = vunpack.c.l.b16 %v344
      %v372 = vpack.c.b16 %v371, %v370
      %v389 = vunpack.c.l.b16 %v345
      %v390 = vunpack.c.l.b16 %v346
      %v391 = vunpack.c.l.b16 %v347
      %v392 = vunpack.c.l.b16 %v348
      %v393 = vunpack.c.l.b16 %v349
      %v394 = vunpack.c.l.b16 %v350
      %v395 = vunpack.c.l.b16 %v351
      %v396 = vunpack.c.l.b16 %v352
      %v397 = vunpack.c.l.b16 %v353
      %v398 = vunpack.c.l.b16 %v354
      %v399 = vunpack.c.l.b16 %v355
      %v400 = vunpack.c.l.b16 %v356
      %v401 = vunpack.c.l.b16 %v357
      %v402 = vunpack.c.l.b16 %v358
      %v403 = vunpack.c.l.b16 %v359
      %v404 = vunpack.c.l.b16 %v360
      %v405 = vpack.c.b16 %v390, %v389
      %v406 = vpack.c.b16 %v392, %v391
      %v407 = vpack.c.b16 %v394, %v393
      %v408 = vpack.c.b16 %v396, %v395
      %v409 = vpack.c.b16 %v398, %v397
      %v410 = vpack.c.b16 %v400, %v399
      %v411 = vpack.c.b16 %v402, %v401
      %v412 = vpack.c.b16 %v404, %v403
      %vm413 = vcmask 64512
      %v415 = vsel %vm413, %v372, 0
      %v418 = vsel %vm413, %v405, 0
      %v421 = vsel %vm413, %v406, 0
      %v424 = vsel %vm413, %v407, 0
      %v427 = vsel %vm413, %v408, 0
      %v430 = vsel %vm413, %v409, 0
      %v433 = vsel %vm413, %v410, 0
      %v436 = vsel %vm413, %v411, 0
      %v439 = vsel %vm413, %v412, 0
      %441 = vmatprep.subr.bf16.mxu0 0
      %442 = vmatpush1.bf16.xpose.msra.mxu0 %v439
      %443 = vmatprep.subr.bf16.mxu0 0
      %444 = vmatpush1.bf16.xpose.msra.mxu0 %v436
      %445 = vmatprep.subr.bf16.mxu0 0
      %446 = vmatpush1.bf16.xpose.msra.mxu0 %v433
      %447 = vmatprep.subr.bf16.mxu0 0
      %448 = vmatpush1.bf16.xpose.msra.mxu0 %v430
      %449 = vmatprep.subr.bf16.mxu0 0
      %450 = vmatpush1.bf16.xpose.msra.mxu0 %v427
      %451 = vmatprep.subr.bf16.mxu0 0
      %452 = vmatpush1.bf16.xpose.msra.mxu0 %v424
      %453 = vmatprep.subr.bf16.mxu0 0
      %454 = vmatpush1.bf16.xpose.msra.mxu0 %v421
      %455 = vmatprep.subr.bf16.mxu0 0
      %456 = vmatpush1.bf16.xpose.msra.mxu0 %v418
      %457 = vmatprep.subr.bf16.mxu0 0
      %458 = vmatpush2.bf16.xpose.msra.mxu0 0
      %459 = vmatprep.subr.bf16.mxu0 0
      %460 = vmatpush2.bf16.xpose.msra.mxu0 0
      %461 = vmatprep.subr.bf16.mxu0 0
      %462 = vmatpush2.bf16.xpose.msra.mxu0 0
      %463 = vmatprep.subr.bf16.mxu0 0
      %464 = vmatpush2.bf16.xpose.msra.mxu0 0
      %465 = vmatprep.subr.bf16.mxu0 0
      %466 = vmatpush2.bf16.xpose.msra.mxu0 0
      %467 = vmatprep.subr.bf16.mxu0 0
      %468 = vmatpush2.bf16.xpose.msra.mxu0 0
      %469 = vmatprep.subr.bf16.mxu0 0
      %470 = vmatpush2.bf16.xpose.msra.mxu0 0
      %471 = vmatprep.subr.bf16.mxu0 0
      %472 = vmatpush2.bf16.xpose.msra.mxu0 0
      %473 = vmatprep.mubr.bf16.mxu0 0
      %474 = vmatmul.mubr.bf16.gmra.mxu0 %v415
      %v475 = vpop.f32.mrf.mxu0
      %v476 = vadd.f32 %v366, %v475
      %v477 = vpop.f32.mrf.mxu0
      %v478 = vpop.f32.mrf.mxu0
      %v479 = vadd.f32 %v366, %v478
      %v480 = vpop.f32.mrf.mxu0
      %481 = vdwg.mxu0
      %v482 = vld [vmem:[#allocation2] sm:$0xff]
      %v483 = vld [vmem:[#allocation2 + $0x8] sm:$0xff]
      %484 = vmax.xlane.f32.xlu0 %v476
      %v485 = vpop.xlane.xlu0 %484
      %486 = vmax.xlane.f32.xlu0 %v479
      %v487 = vpop.xlane.xlu0 %486
      %v488 = vmax.f32 %v482, %v485
      %v489 = vmax.f32 %v483, %v487
      %v490 = vsub.f32 %v482, %v488
      %v491 = vsub.f32 %v483, %v489
      %v492 = vmul.f32 %v490, 1.442695
      %v493 = vpow.pop %v492
      %v494 = vmul.f32 %v491, 1.442695
      %v495 = vpow.pop %v494
      %497 = vset.pattern.permute.xlu0 0
      %498 = vperm.xlu0 %497, %v488
      %v499 = vpop.permute.xlu0 %498
      %502 = vset.pattern.permute.xlu0 0
      %503 = vperm.xlu0 %502, %v489
      %v504 = vpop.permute.xlu0 %503
      %v506 = vsub.f32 %v476, %v499
      %v507 = vsub.f32 %v479, %v504
      %v508 = vmul.f32 %v506, 1.442695
      %v509 = vpow.pop %v508
      %v510 = vmul.f32 %v507, 1.442695
      %v511 = vpow.pop %v510
      %v512 = vld [vmem:[#allocation3] sm:$0xff]
      %v513 = vld [vmem:[#allocation3 + $0x8] sm:$0xff]
      %v514 = vmul.f32 %v493, %v512
      %v515 = vmul.f32 %v495, %v513
      %516 = vadd.xlane.f32.xlu0 %v509
      %v517 = vpop.xlane.xlu0 %516
      %518 = vadd.xlane.f32.xlu0 %v511
      %v519 = vpop.xlane.xlu0 %518
      %v520 = vadd.f32 %v514, %v517
      %v521 = vadd.f32 %v515, %v519
      %vm522 = vcmask 7168
      %523 = vst.msk [vmem:[#allocation3] sm:$0xff] %vm522, %v520
      %524 = vst.msk [vmem:[#allocation3 + $0x8] sm:$0xff] %vm522, %v521
      %v525 = vld [vmem:[#allocation4] sm:$0xff]
      %v526 = vld [vmem:[#allocation4 + $0x8] sm:$0xff]
      %528 = vset.pattern.permute.xlu0 0
      %529 = vperm.xlu0 %528, %v493
      %v530 = vpop.permute.xlu0 %529
      %533 = vset.pattern.permute.xlu0 0
      %534 = vperm.xlu0 %533, %v495
      %v535 = vpop.permute.xlu0 %534
      %v537 = vmul.f32 %v530, %v525
      %v538 = vmul.f32 %v535, %v526
      %v539 = vpack.c.bf16 %v511, %v509
      %v540 = vld [vmem:[%s315] sm:$0xf]
      %v541 = vld [vmem:[%s315 + $0x4] sm:$0xf]
      %v542 = vld [vmem:[%s315 + $0x8] sm:$0xf]
      %v543 = vld [vmem:[%s315 + $0xc] sm:$0xf]
      %v544 = vld [vmem:[%s315 + $0x10] sm:$0xf]
      %v545 = vld [vmem:[%s315 + $0x14] sm:$0xf]
      %v546 = vld [vmem:[%s315 + $0x18] sm:$0xf]
      %v547 = vld [vmem:[%s315 + $0x1c] sm:$0xf]
      %v548 = vld [vmem:[%s315 + $0x20] sm:$0xf]
      %v549 = vld [vmem:[%s315 + $0x24] sm:$0xf]
      %v550 = vld [vmem:[%s315 + $0x28] sm:$0xf]
      %v551 = vld [vmem:[%s315 + $0x2c] sm:$0xf]
      %v552 = vld [vmem:[%s315 + $0x30] sm:$0xf]
      %v553 = vld [vmem:[%s315 + $0x34] sm:$0xf]
      %v554 = vld [vmem:[%s315 + $0x38] sm:$0xf]
      %v555 = vld [vmem:[%s315 + $0x3c] sm:$0xf]
      %v572 = vunpack.c.l.b16 %v540
      %v573 = vunpack.c.l.b16 %v541
      %v574 = vunpack.c.l.b16 %v542
      %v575 = vunpack.c.l.b16 %v543
      %v576 = vunpack.c.l.b16 %v544
      %v577 = vunpack.c.l.b16 %v545
      %v578 = vunpack.c.l.b16 %v546
      %v579 = vunpack.c.l.b16 %v547
      %v580 = vunpack.c.l.b16 %v548
      %v581 = vunpack.c.l.b16 %v549
      %v582 = vunpack.c.l.b16 %v550
      %v583 = vunpack.c.l.b16 %v551
      %v584 = vunpack.c.l.b16 %v552
      %v585 = vunpack.c.l.b16 %v553
      %v586 = vunpack.c.l.b16 %v554
      %v587 = vunpack.c.l.b16 %v555
      %v588 = vpack.c.b16 %v573, %v572
      %v589 = vpack.c.b16 %v575, %v574
      %v590 = vpack.c.b16 %v577, %v576
      %v591 = vpack.c.b16 %v579, %v578
      %v592 = vpack.c.b16 %v581, %v580
      %v593 = vpack.c.b16 %v583, %v582
      %v594 = vpack.c.b16 %v585, %v584
      %v595 = vpack.c.b16 %v587, %v586
      %604 = vmatprep.subr.bf16.mxu0 0
      %605 = vmatpush1.bf16.msra.mxu0 %v595
      %606 = vmatprep.subr.bf16.mxu0 0
      %607 = vmatpush1.bf16.msra.mxu0 %v594
      %608 = vmatprep.subr.bf16.mxu0 0
      %609 = vmatpush1.bf16.msra.mxu0 %v593
      %610 = vmatprep.subr.bf16.mxu0 0
      %611 = vmatpush1.bf16.msra.mxu0 %v592
      %612 = vmatprep.subr.bf16.mxu0 0
      %613 = vmatpush1.bf16.msra.mxu0 %v591
      %614 = vmatprep.subr.bf16.mxu0 0
      %615 = vmatpush1.bf16.msra.mxu0 %v590
      %616 = vmatprep.subr.bf16.mxu0 0
      %617 = vmatpush1.bf16.msra.mxu0 %v589
      %618 = vmatprep.subr.bf16.mxu0 0
      %619 = vmatpush1.bf16.msra.mxu0 %v588
      %620 = vmatprep.subr.bf16.mxu0 0
      %621 = vmatpush2.bf16.msra.mxu0 0
      %622 = vmatprep.subr.bf16.mxu0 0
      %623 = vmatpush2.bf16.msra.mxu0 0
      %624 = vmatprep.subr.bf16.mxu0 0
      %625 = vmatpush2.bf16.msra.mxu0 0
      %626 = vmatprep.subr.bf16.mxu0 0
      %627 = vmatpush2.bf16.msra.mxu0 0
      %628 = vmatprep.subr.bf16.mxu0 0
      %629 = vmatpush2.bf16.msra.mxu0 0
      %630 = vmatprep.subr.bf16.mxu0 0
      %631 = vmatpush2.bf16.msra.mxu0 0
      %632 = vmatprep.subr.bf16.mxu0 0
      %633 = vmatpush2.bf16.msra.mxu0 0
      %634 = vmatprep.subr.bf16.mxu0 0
      %635 = vmatpush2.bf16.msra.mxu0 0
      %636 = vmatprep.mubr.bf16.mxu0 0
      %637 = vmatmul.mubr.bf16.gmra.mxu0 %v539
      %v638 = vpop.f32.mrf.mxu0
      %v639 = vadd.f32 0.0, %v638
      %v640 = vpop.f32.mrf.mxu0
      %v641 = vpop.f32.mrf.mxu0
      %v642 = vadd.f32 0.0, %v641
      %v643 = vpop.f32.mrf.mxu0
      %644 = vdwg.mxu0
      %v645 = vadd.f32 %v537, %v639
      %v646 = vadd.f32 %v538, %v642
      %647 = vst.msk [vmem:[#allocation4] sm:$0xff] %vm413, %v645
      %648 = vst.msk [vmem:[#allocation4 + $0x8] sm:$0xff] %vm413, %v646
      %649 = vst.msk [vmem:[#allocation2] sm:$0xff] %vm522, %v488
      %650 = vst.msk [vmem:[#allocation2 + $0x8] sm:$0xff] %vm522, %v489
      // Predicated region
      $region41: #{mom_attention_forward.4} parent=35 // pred_check
        %p651 = pneg %p331
      $region42: #{mom_attention_forward.4} parent=35 // pred_check_branch
        %653 = sbr.rel (%p651) target = $region44
      $region43: #{mom_attention_forward.4} parent=35 // pred_region
        %v654 = vld [vmem:[#allocation4] sm:$0xff]
        %v655 = vld [vmem:[#allocation4 + $0x8] sm:$0xff]
        %v656 = vld [vmem:[#allocation3] sm:$0xff]
        %v657 = vld [vmem:[#allocation3 + $0x8] sm:$0xff]
        %v658 = vrcp.pop %v656
        %v659 = vrcp.pop %v657
        %661 = vset.pattern.permute.xlu0 0
        %662 = vperm.xlu0 %661, %v658
        %v663 = vpop.permute.xlu0 %662
        %666 = vset.pattern.permute.xlu0 0
        %667 = vperm.xlu0 %666, %v659
        %v668 = vpop.permute.xlu0 %667
        %v670 = vmul.f32 %v654, %v663
        %v671 = vmul.f32 %v655, %v668
        %v672 = vpack.c.bf16 %v671, %v670
        %v674 = vunpack.c.l.b16 %v672
        %v675 = vunpack.c.h.b16 %v672
        %v676 = vpack.c.b16 %v674, %v674
        %v677 = vpack.c.b16 %v675, %v675
        %vm680 = vcmask 60416
        %681 = vst.msk [vmem:[%s328] sm:$0xf] %vm680, %v676
        %682 = vst.msk [vmem:[%s328 + $0x4] sm:$0xf] %vm680, %v677
      $region44: #{mom_attention_forward.4} parent=35 // pred_fallthru
        _
      %s683 = smul.u32 2, %s21
      %p684 = scmp.lt.s32.totalorder %s20, 7
      %s685 = scalar_select %p684, %s20, 7
      %p686 = scmp.lt.s32.totalorder %s683, 1
      %s687 = scalar_select %p686, %s683, 1
      %s688 = smul.addr %s685, 2
      %s689 = sadd.s32 %s687, %s688
      %s690 = smul.addr %s689, 4
      %s691 = scalar_lea.vmem %s4, %s690
      // Predicated region
      $region45: #{mom_attention_forward.4} parent=35 // pred_check
        %p692 = pneg %p164
      $region46: #{mom_attention_forward.4} parent=35 // pred_check_branch
        %694 = sbr.rel (%p692) target = $region48
      $region47: #{mom_attention_forward.4} parent=35 // pred_region
        %s695 = smul.u32 2, %s21
      $region48: #{mom_attention_forward.4} parent=35 // pred_fallthru
        _
    $region36: #{mom_attention_forward.4} parent=5 // pred_fallthru
      _
    %p696 = scmp.le.s32.totalorder 2, %s10
    // Predicated region
    $region49: #{mom_attention_forward.4} parent=5 // pred_check
      %p697 = pneg %p696
    $region50: #{mom_attention_forward.4} parent=5 // pred_check_branch
      %699 = sbr.rel (%p697) target = $region52
    $region51: #{mom_attention_forward.4} parent=5 // pred_region
      %s700 = ssub.s32 %s10, 2
      // Predicated region
      $region53: #{mom_attention_forward.4} parent=51 // pred_check
        %p701 = pneg %p170
      $region54: #{mom_attention_forward.4} parent=51 // pred_check_branch
        %703 = sbr.rel (%p701) target = $region56
      $region55: #{mom_attention_forward.4} parent=51 // pred_region
        %s704 = smul.u32 2, %s24
        %p705 = scmp.lt.s32.totalorder %s23, 7
        %s706 = scalar_select %p705, %s23, 7
        %p707 = scmp.lt.s32.totalorder %s704, 1
        %s708 = scalar_select %p707, %s704, 1
        %s709 = smul.addr %s706, 2
        %s710 = sadd.s32 %s708, %s709
        %s711 = smul.addr %s710, 4
        %s712 = scalar_lea.vmem %s4, %s711
      $region56: #{mom_attention_forward.4} parent=51 // pred_fallthru
        _
    $region52: #{mom_attention_forward.4} parent=5 // pred_fallthru
      _
  $region6: #{mom_attention_forward.4} parent=0 // loop_footer
    %s14 = sadd.s32 1, %s10
  $region7: #{mom_attention_forward.4} parent=0 // loop_footer_branch
    %9 = sbr.rel target = $region3
  $region8: #{mom_attention_forward.4} parent=0 // loop_exit
    _

</llo_original>
